<compile_context>
chip_gen: v7x
topology: tpu7x:2x2x1
jax: 0.10.0
libtpu: 0.0.40
codegen_flags: <defaults>
</compile_context>

<pallas_src>
import jax
import jax.numpy as jnp
from jax.experimental import pallas as pl
from jax.experimental.pallas import tpu as pltpu

INPUT_NUM = 784   # MNIST 28*28
OUTPUT_NUM = 10   # 10 digit classes
H1, H2, H3 = 400, 200, 100

LANE = 128


def _round_up(v, m):
    return (v + m - 1) // m * m


# Padded (lane-aligned) dimensions.
D_IN_P = _round_up(INPUT_NUM, LANE)    # 896
H1_P = _round_up(H1, LANE)             # 512
H2_P = _round_up(H2, LANE)             # 256
H3_P = _round_up(H3, LANE)             # 128
D_OUT_P = _round_up(OUTPUT_NUM, LANE)  # 128


def mlp_kernel(x_ref,
               w1_ref, b1_ref,
               w2_ref, b2_ref,
               w3_ref, b3_ref,
               w4_ref, b4_ref,
               o_ref):
    # Hoist bias reads once per invocation.
    b1 = b1_ref[...]
    b2 = b2_ref[...]
    b3 = b3_ref[...]
    b4 = b4_ref[...]

    # layer1 + ReLU (bf16 operands, f32 accumulation)
    h = jnp.dot(x_ref[...], w1_ref[...], preferred_element_type=jnp.float32)
    h = jnp.maximum(h + b1, 0.0)
    # layer3 + ReLU
    h = jnp.dot(h.astype(jnp.bfloat16), w2_ref[...],
                preferred_element_type=jnp.float32)
    h = jnp.maximum(h + b2, 0.0)
    # layer5 + ReLU
    h = jnp.dot(h.astype(jnp.bfloat16), w3_ref[...],
                preferred_element_type=jnp.float32)
    h = jnp.maximum(h + b3, 0.0)
    # layer7 (no activation)
    h = jnp.dot(h.astype(jnp.bfloat16), w4_ref[...],
                preferred_element_type=jnp.float32)
    o_ref[...] = (h + b4).astype(o_ref.dtype)


def pad_params(params):
    """Zero-pad (in,out) weights / (1,out) biases to 128-multiples.

    Weights -> bfloat16, biases stay float32.  Padded columns/rows are zero,
    which is numerically inert through the ReLU chain, so the sliced result
    is identical to the unpadded computation.
    """
    dims = [(INPUT_NUM, H1), (H1, H2), (H2, H3), (H3, OUTPUT_NUM)]
    padded = {}
    for idx, (fi, fo) in enumerate(dims, start=1):
        fi_p, fo_p = _round_up(fi, LANE), _round_up(fo, LANE)
        w = jnp.zeros((fi_p, fo_p), jnp.bfloat16)
        w = w.at[:fi, :fo].set(params[f"w{idx}"].astype(jnp.bfloat16))
        b = jnp.zeros((1, fo_p), jnp.float32)
        b = b.at[:, :fo].set(params[f"b{idx}"].astype(jnp.float32))
        padded[f"w{idx}"] = w
        padded[f"b{idx}"] = b
    return padded


def mnist_net_forward(x, params, *, tile_b=512):
    """x: (B, INPUT_NUM) float32.  params: raw (in,out)/(1,out) float32 params.

    tile_b is the batch tile (sweepable; 256-1024 is the sweet spot on
    v5e/v6e/v7x).  For small B the tile shrinks and the batch is zero-padded
    so the kernel always runs with lane-aligned, full tiles.
    """
    B, Din = x.shape
    assert Din == INPUT_NUM

    pp = pad_params(params)

    # Effective tile: no larger than the (8-rounded) batch, and pad the batch
    # up to a multiple of the tile so every grid step is a full tile.
    tb = min(tile_b, _round_up(B, 8))
    B_p = _round_up(B, tb)

    x_p = jnp.zeros((B_p, D_IN_P), jnp.bfloat16)
    x_p = x_p.at[:B, :Din].set(x.astype(jnp.bfloat16))

    w1, b1 = pp["w1"], pp["b1"]
    w2, b2 = pp["w2"], pp["b2"]
    w3, b3 = pp["w3"], pp["b3"]
    w4, b4 = pp["w4"], pp["b4"]

    # Weights/biases: full arrays, constant index_map -> resident in VMEM
    # across the whole batch grid.
    full = lambda shape: pl.BlockSpec(shape, lambda i: (0,) * len(shape))

    grid_spec = pltpu.PrefetchScalarGridSpec(
        num_scalar_prefetch=0,
        grid=(B_p // tb,),
        in_specs=[
            pl.BlockSpec((tb, D_IN_P), lambda i: (i, 0)),
            full(w1.shape), full(b1.shape),
            full(w2.shape), full(b2.shape),
            full(w3.shape), full(b3.shape),
            full(w4.shape), full(b4.shape),
        ],
        out_specs=pl.BlockSpec((tb, D_OUT_P), lambda i: (i, 0)),
    )

    out_p = pl.pallas_call(
        mlp_kernel,
        out_shape=jax.ShapeDtypeStruct((B_p, D_OUT_P), jnp.float32),
        grid_spec=grid_spec,
        compiler_params=pltpu.CompilerParams(
            dimension_semantics=("parallel",),
            vmem_limit_bytes=32 * 1024 * 1024,
        ),
    )(x_p, w1, b1, w2, b2, w3, b3, w4, b4)

    # Slice away the batch padding and the lane padding of the output.
    return out_p[:B, :OUTPUT_NUM]


def init_params(key):
    """Deterministic synthetic params matching nn.Linear shapes (transposed to (in,out))."""
    dims = [(INPUT_NUM, H1), (H1, H2), (H2, H3), (H3, OUTPUT_NUM)]
    params = {}
    for idx, (fan_in, fan_out) in enumerate(dims, start=1):
        key, kw, kb = jax.random.split(key, 3)
        bound = 1.0 / (fan_in ** 0.5)  # torch nn.Linear default init range
        params[f"w{idx}"] = jax.random.uniform(
            kw, (fan_in, fan_out), jnp.float32, -bound, bound)
        params[f"b{idx}"] = jax.random.uniform(
            kb, (1, fan_out), jnp.float32, -bound, bound)
    return params


def reference_forward_bf16(x, p):
    """Mirrors the kernel's precision choices (bf16 operands, f32 accumulation)."""
    def lin(h, w, b):
        return jnp.dot(h.astype(jnp.bfloat16), w.astype(jnp.bfloat16),
                       preferred_element_type=jnp.float32) + b
    h = jnp.maximum(lin(x, p["w1"], p["b1"]), 0.0)
    h = jnp.maximum(lin(h, p["w2"], p["b2"]), 0.0)
    h = jnp.maximum(lin(h, p["w3"], p["b3"]), 0.0)
    return lin(h, p["w4"], p["b4"])


def reference_forward_f32(x, p):
    h = jnp.maximum(x @ p["w1"] + p["b1"], 0.0)
    h = jnp.maximum(h @ p["w2"] + p["b2"], 0.0)
    h = jnp.maximum(h @ p["w3"] + p["b3"], 0.0)
    return h @ p["w4"] + p["b4"]


if __name__ == "__main__":
    key = jax.random.PRNGKey(0)
    kx, kp = jax.random.split(key)
    B = 8  # small test batch; production use would pass B in the hundreds+
    x = jax.random.normal(kx, (B, INPUT_NUM), jnp.float32)
    params = init_params(kp)

    out = mnist_net_forward(x, params)
    out = jax.block_until_ready(out)
    assert out.shape == (B, OUTPUT_NUM)

    # Tight check vs. a reference with the same bf16/f32 precision policy.
    ref_bf16 = reference_forward_bf16(x, params)
    assert jnp.allclose(out, ref_bf16, atol=1e-2, rtol=1e-2), \
        "mismatch vs bf16 reference"
    # Looser sanity check vs. the full-f32 reference (bf16 rounding only).
    ref_f32 = reference_forward_f32(x, params)
    assert jnp.allclose(out, ref_f32, atol=7e-2, rtol=7e-2), \
        "mismatch vs f32 reference"

    print("KERNEL_OK")
</pallas_src>

<mosaic_0001>
module attributes {stable_mosaic.version = 11 : i64} {
  func.func @mlp_kernel(%arg0: i32, %arg1: memref<8x896xbf16, #tpu.memory_space<vmem>>, %arg2: memref<896x512xbf16, #tpu.memory_space<vmem>>, %arg3: memref<1x512xf32, #tpu.memory_space<vmem>>, %arg4: memref<512x256xbf16, #tpu.memory_space<vmem>>, %arg5: memref<1x256xf32, #tpu.memory_space<vmem>>, %arg6: memref<256x128xbf16, #tpu.memory_space<vmem>>, %arg7: memref<1x128xf32, #tpu.memory_space<vmem>>, %arg8: memref<128x128xbf16, #tpu.memory_space<vmem>>, %arg9: memref<1x128xf32, #tpu.memory_space<vmem>>, %arg10: memref<8x128xf32, #tpu.memory_space<vmem>>) attributes {dimension_semantics = [#tpu.dimension_semantics<parallel>], iteration_bounds = array<i64: 1>, scalar_prefetch = 0 : i64, scratch_operands = 0 : i64, tpu.core_type = #tpu.core_type<tc>, window_params = [{transform_indices = @transform_0, window_bounds = array<i64: 8, 896>}, {pipeline_mode = #tpu.pipeline_mode<synchronous>, transform_indices = @transform_1, window_bounds = array<i64: 896, 512>}, {pipeline_mode = #tpu.pipeline_mode<synchronous>, transform_indices = @transform_2, window_bounds = array<i64: 1, 512>}, {pipeline_mode = #tpu.pipeline_mode<synchronous>, transform_indices = @transform_3, window_bounds = array<i64: 512, 256>}, {pipeline_mode = #tpu.pipeline_mode<synchronous>, transform_indices = @transform_4, window_bounds = array<i64: 1, 256>}, {pipeline_mode = #tpu.pipeline_mode<synchronous>, transform_indices = @transform_5, window_bounds = array<i64: 256, 128>}, {pipeline_mode = #tpu.pipeline_mode<synchronous>, transform_indices = @transform_6, window_bounds = array<i64: 1, 128>}, {pipeline_mode = #tpu.pipeline_mode<synchronous>, transform_indices = @transform_7, window_bounds = array<i64: 128, 128>}, {pipeline_mode = #tpu.pipeline_mode<synchronous>, transform_indices = @transform_8, window_bounds = array<i64: 1, 128>}, {transform_indices = @transform_9, window_bounds = array<i64: 8, 128>}]} {
    %c0 = arith.constant 0 : index
    %c0_0 = arith.constant 0 : index
    %0 = vector.load %arg3[%c0, %c0_0] : memref<1x512xf32, #tpu.memory_space<vmem>>, vector<1x512xf32>
    %c0_1 = arith.constant 0 : index
    %c0_2 = arith.constant 0 : index
    %1 = vector.load %arg5[%c0_1, %c0_2] : memref<1x256xf32, #tpu.memory_space<vmem>>, vector<1x256xf32>
    %c0_3 = arith.constant 0 : index
    %c0_4 = arith.constant 0 : index
    %2 = vector.load %arg7[%c0_3, %c0_4] : memref<1x128xf32, #tpu.memory_space<vmem>>, vector<1x128xf32>
    %c0_5 = arith.constant 0 : index
    %c0_6 = arith.constant 0 : index
    %3 = vector.load %arg9[%c0_5, %c0_6] : memref<1x128xf32, #tpu.memory_space<vmem>>, vector<1x128xf32>
    %c0_7 = arith.constant 0 : index
    %c0_8 = arith.constant 0 : index
    %4 = vector.load %arg1[%c0_7, %c0_8] : memref<8x896xbf16, #tpu.memory_space<vmem>>, vector<8x896xbf16>
    %c0_9 = arith.constant 0 : index
    %c0_10 = arith.constant 0 : index
    %5 = vector.load %arg2[%c0_9, %c0_10] : memref<896x512xbf16, #tpu.memory_space<vmem>>, vector<896x512xbf16>
    %cst = arith.constant dense<0.000000e+00> : vector<8x512xf32>
    %6 = tpu.matmul %4, %5, %cst {dimension_numbers = #tpu.dot_dimension_numbers<[1], [0], [0], [1], [0, 0, 1, 1], [], []>} : vector<8x896xbf16>, vector<896x512xbf16>, vector<8x512xf32> -> vector<8x512xf32>
    %7 = vector.broadcast %0 : vector<1x512xf32> to vector<8x512xf32>
    %8 = arith.addf %6, %7 : vector<8x512xf32>
    %cst_11 = arith.constant 0.000000e+00 : f32
    %9 = vector.broadcast %cst_11 : f32 to vector<8x512xf32>
    %10 = arith.maximumf %8, %9 : vector<8x512xf32>
    %11 = arith.truncf %10 : vector<8x512xf32> to vector<8x512xbf16>
    %c0_12 = arith.constant 0 : index
    %c0_13 = arith.constant 0 : index
    %12 = vector.load %arg4[%c0_12, %c0_13] : memref<512x256xbf16, #tpu.memory_space<vmem>>, vector<512x256xbf16>
    %cst_14 = arith.constant dense<0.000000e+00> : vector<8x256xf32>
    %13 = tpu.matmul %11, %12, %cst_14 {dimension_numbers = #tpu.dot_dimension_numbers<[1], [0], [0], [1], [0, 0, 1, 1], [], []>} : vector<8x512xbf16>, vector<512x256xbf16>, vector<8x256xf32> -> vector<8x256xf32>
    %14 = vector.broadcast %1 : vector<1x256xf32> to vector<8x256xf32>
    %15 = arith.addf %13, %14 : vector<8x256xf32>
    %cst_15 = arith.constant 0.000000e+00 : f32
    %16 = vector.broadcast %cst_15 : f32 to vector<8x256xf32>
    %17 = arith.maximumf %15, %16 : vector<8x256xf32>
    %18 = arith.truncf %17 : vector<8x256xf32> to vector<8x256xbf16>
    %c0_16 = arith.constant 0 : index
    %c0_17 = arith.constant 0 : index
    %19 = vector.load %arg6[%c0_16, %c0_17] : memref<256x128xbf16, #tpu.memory_space<vmem>>, vector<256x128xbf16>
    %cst_18 = arith.constant dense<0.000000e+00> : vector<8x128xf32>
    %20 = tpu.matmul %18, %19, %cst_18 {dimension_numbers = #tpu.dot_dimension_numbers<[1], [0], [0], [1], [0, 0, 1, 1], [], []>} : vector<8x256xbf16>, vector<256x128xbf16>, vector<8x128xf32> -> vector<8x128xf32>
    %21 = vector.broadcast %2 : vector<1x128xf32> to vector<8x128xf32>
    %22 = arith.addf %20, %21 : vector<8x128xf32>
    %cst_19 = arith.constant 0.000000e+00 : f32
    %23 = vector.broadcast %cst_19 : f32 to vector<8x128xf32>
    %24 = arith.maximumf %22, %23 : vector<8x128xf32>
    %25 = arith.truncf %24 : vector<8x128xf32> to vector<8x128xbf16>
    %c0_20 = arith.constant 0 : index
    %c0_21 = arith.constant 0 : index
    %26 = vector.load %arg8[%c0_20, %c0_21] : memref<128x128xbf16, #tpu.memory_space<vmem>>, vector<128x128xbf16>
    %cst_22 = arith.constant dense<0.000000e+00> : vector<8x128xf32>
    %27 = tpu.matmul %25, %26, %cst_22 {dimension_numbers = #tpu.dot_dimension_numbers<[1], [0], [0], [1], [0, 0, 1, 1], [], []>} : vector<8x128xbf16>, vector<128x128xbf16>, vector<8x128xf32> -> vector<8x128xf32>
    %28 = vector.broadcast %3 : vector<1x128xf32> to vector<8x128xf32>
    %29 = arith.addf %27, %28 : vector<8x128xf32>
    %c0_23 = arith.constant 0 : index
    %c0_24 = arith.constant 0 : index
    %30 = vector.load %arg10[%c0_23, %c0_24] : memref<8x128xf32, #tpu.memory_space<vmem>>, vector<8x128xf32>
    tpu.vector_store %arg10[%c0_23, %c0_24], %29 {strides = array<i32>} : memref<8x128xf32, #tpu.memory_space<vmem>>, vector<8x128xf32>,
    return
  }
  func.func @transform_0(%arg0: i32) -> (i32, i32) {
    %c0_i32 = arith.constant 0 : i32
    %c0_i32_0 = arith.constant 0 : i32
    return %arg0, %c0_i32 : i32, i32
  }
  func.func @transform_1(%arg0: i32) -> (i32, i32) {
    %c0_i32 = arith.constant 0 : i32
    %c0_i32_0 = arith.constant 0 : i32
    %c0_i32_1 = arith.constant 0 : i32
    return %c0_i32, %c0_i32_0 : i32, i32
  }
  func.func @transform_2(%arg0: i32) -> (i32, i32) {
    %c0_i32 = arith.constant 0 : i32
    %c0_i32_0 = arith.constant 0 : i32
    %c0_i32_1 = arith.constant 0 : i32
    return %c0_i32, %c0_i32_0 : i32, i32
  }
  func.func @transform_3(%arg0: i32) -> (i32, i32) {
    %c0_i32 = arith.constant 0 : i32
    %c0_i32_0 = arith.constant 0 : i32
    %c0_i32_1 = arith.constant 0 : i32
    return %c0_i32, %c0_i32_0 : i32, i32
  }
  func.func @transform_4(%arg0: i32) -> (i32, i32) {
    %c0_i32 = arith.constant 0 : i32
    %c0_i32_0 = arith.constant 0 : i32
    %c0_i32_1 = arith.constant 0 : i32
    return %c0_i32, %c0_i32_0 : i32, i32
  }
  func.func @transform_5(%arg0: i32) -> (i32, i32) {
    %c0_i32 = arith.constant 0 : i32
    %c0_i32_0 = arith.constant 0 : i32
    %c0_i32_1 = arith.constant 0 : i32
    return %c0_i32, %c0_i32_0 : i32, i32
  }
  func.func @transform_6(%arg0: i32) -> (i32, i32) {
    %c0_i32 = arith.constant 0 : i32
    %c0_i32_0 = arith.constant 0 : i32
    %c0_i32_1 = arith.constant 0 : i32
    return %c0_i32, %c0_i32_0 : i32, i32
  }
  func.func @transform_7(%arg0: i32) -> (i32, i32) {
    %c0_i32 = arith.constant 0 : i32
    %c0_i32_0 = arith.constant 0 : i32
    %c0_i32_1 = arith.constant 0 : i32
    return %c0_i32, %c0_i32_0 : i32, i32
  }
  func.func @transform_8(%arg0: i32) -> (i32, i32) {
    %c0_i32 = arith.constant 0 : i32
    %c0_i32_0 = arith.constant 0 : i32
    %c0_i32_1 = arith.constant 0 : i32
    return %c0_i32, %c0_i32_0 : i32, i32
  }
  func.func @transform_9(%arg0: i32) -> (i32, i32) {
    %c0_i32 = arith.constant 0 : i32
    %c0_i32_0 = arith.constant 0 : i32
    return %arg0, %c0_i32 : i32, i32
  }
}

</mosaic_0001>

<llo_original>
// kernel: tpu_custom_call.1
$region0: #{tpu_custom_call.1}
  #allocation0 [shape = 'u32[]', space=smem, size = 0x4, offset = 0x4, fixed_abs, tag = 'smem constant byte address 0x4 - core index']
  #allocation1 [shape = 'u32[144,128]{1,0:T(1,128)}', space=vmem, size = 0x12000, scoped, tag = 'internal scratch']
  %s0 = inlined_call_operand.hbm [shape: bf16[8,896], index: 0, kind: input, shape index: {}]
  %s1 = inlined_call_operand.hbm [shape: bf16[896,512], index: 1, kind: input, shape index: {}]
  %s2 = inlined_call_operand.vmem [shape: f32[1,512], index: 2, kind: input, shape index: {}]
  %s3 = inlined_call_operand.hbm [shape: bf16[512,256], index: 3, kind: input, shape index: {}]
  %s4 = inlined_call_operand.vmem [shape: f32[1,256], index: 4, kind: input, shape index: {}]
  %s5 = inlined_call_operand.hbm [shape: bf16[256,128], index: 5, kind: input, shape index: {}]
  %s6 = inlined_call_operand.vmem [shape: f32[1,128], index: 6, kind: input, shape index: {}]
  %s7 = inlined_call_operand.hbm [shape: bf16[128,128], index: 7, kind: input, shape index: {}]
  %s8 = inlined_call_operand.vmem [shape: f32[1,128], index: 8, kind: input, shape index: {}]
  %s9 = inlined_call_operand.hbm [shape: f32[8,128], index: 9, kind: output, shape index: {}]
  %s10 = sld [smem:[#allocation0]]
  $region66: #{tpu_custom_call.1} parent=0
    _
  %s12 = ssub.s32 1, %s10
  %s13 = scalar_select 0, %s12, %s10
  $region1: #{tpu_custom_call.1} parent=0
    #allocation2 [shape = 'u8[14336]{0}', space=vmem, size = 0x3800, scoped, tag = 'input window, operand 0, single buffered']
    #allocation3 [shape = 's32[1]{0}', space=sflag, size = 0x4, scoped, tag = 'scoped memory for tpu_custom_call.1']
    #allocation4 [shape = 's32[1]{0}', space=sflag, size = 0x4, scoped, tag = 'scoped memory for tpu_custom_call.1']
    #allocation5 [shape = 'u8[917504]{0}', space=vmem, size = 0xe0000, scoped, tag = 'input window, operand 1, single buffered']
    #allocation6 [shape = 's32[1]{0}', space=sflag, size = 0x4, scoped, tag = 'scoped memory for tpu_custom_call.1']
    #allocation7 [shape = 'u8[262144]{0}', space=vmem, size = 0x40000, scoped, tag = 'input window, operand 3, single buffered']
    #allocation8 [shape = 'u8[65536]{0}', space=vmem, size = 0x10000, scoped, tag = 'input window, operand 5, single buffered']
    #allocation9 [shape = 's32[1]{0}', space=sflag, size = 0x4, scoped, tag = 'scoped memory for tpu_custom_call.1']
    #allocation10 [shape = 'u8[32768]{0}', space=vmem, size = 0x8000, scoped, tag = 'input window, operand 7, single buffered']
    #allocation11 [shape = 'u8[4096]{0}', space=vmem, size = 0x1000, scoped, tag = 'output window, operand 0, single buffered']
    %14 = vsyncpa [#allocation3], 0
    %15 = vsyncpa [#allocation6], 0
    %16 = vsyncpa [#allocation9], 0
    %17 = vsyncpa [#allocation4], 0
    // Predicated region
    $region2: #{tpu_custom_call.1} parent=1 // pred_check
      _
    $region3: #{tpu_custom_call.1} parent=1 // pred_check_branch
      %19 = sbr.rel (0) target = $region5
    $region4: #{tpu_custom_call.1} parent=1 // pred_region
      %s21 = ssub.s32 448, 448
      %22 = vsyncadd [#allocation3], %s21
      %s24 = sshll.u32 [#allocation2], 4
      %s25 = int_to_ptr.vmem [resolvable:$true] %s24
      %27 = dma.hbm_to_vmem [thread:$0]  %s0, 448, %s25, [#allocation3]
    $region5: #{tpu_custom_call.1} parent=1 // pred_fallthru
      _
    // Predicated region
    $region6: #{tpu_custom_call.1} parent=1 // pred_check
      _
    $region7: #{tpu_custom_call.1} parent=1 // pred_check_branch
      %29 = sbr.rel (0) target = $region9
    $region8: #{tpu_custom_call.1} parent=1 // pred_region
      %s31 = ssub.s32 28672, 28672
      %32 = vsyncadd [#allocation6], %s31
      %s33 = sshll.u32 [#allocation5], 4
      %s34 = int_to_ptr.vmem [resolvable:$true] %s33
      %39 = dma.hbm_to_vmem [thread:$0]  %s1, 28672, %s34, [#allocation6], 256, 256, 16
    $region9: #{tpu_custom_call.1} parent=1 // pred_fallthru
      _
    // Predicated region
    $region10: #{tpu_custom_call.1} parent=1 // pred_check
      _
    $region11: #{tpu_custom_call.1} parent=1 // pred_check_branch
      %41 = sbr.rel (0) target = $region13
    $region12: #{tpu_custom_call.1} parent=1 // pred_region
      _
    $region13: #{tpu_custom_call.1} parent=1 // pred_fallthru
      _
    // Predicated region
    $region14: #{tpu_custom_call.1} parent=1 // pred_check
      _
    $region15: #{tpu_custom_call.1} parent=1 // pred_check_branch
      %43 = sbr.rel (0) target = $region17
    $region16: #{tpu_custom_call.1} parent=1 // pred_region
      %s45 = ssub.s32 8192, 8192
      %46 = vsyncadd [#allocation6], %s45
      %s47 = sshll.u32 [#allocation7], 4
      %s48 = int_to_ptr.vmem [resolvable:$true] %s47
      %53 = dma.hbm_to_vmem [thread:$0]  %s3, 8192, %s48, [#allocation6], 128, 128, 8
    $region17: #{tpu_custom_call.1} parent=1 // pred_fallthru
      _
    // Predicated region
    $region18: #{tpu_custom_call.1} parent=1 // pred_check
      _
    $region19: #{tpu_custom_call.1} parent=1 // pred_check_branch
      %55 = sbr.rel (0) target = $region21
    $region20: #{tpu_custom_call.1} parent=1 // pred_region
      _
    $region21: #{tpu_custom_call.1} parent=1 // pred_fallthru
      _
    // Predicated region
    $region22: #{tpu_custom_call.1} parent=1 // pred_check
      _
    $region23: #{tpu_custom_call.1} parent=1 // pred_check_branch
      %57 = sbr.rel (0) target = $region25
    $region24: #{tpu_custom_call.1} parent=1 // pred_region
      %s59 = ssub.s32 2048, 2048
      %60 = vsyncadd [#allocation9], %s59
      %s61 = sshll.u32 [#allocation8], 4
      %s62 = int_to_ptr.vmem [resolvable:$true] %s61
      %67 = dma.hbm_to_vmem [thread:$0]  %s5, 2048, %s62, [#allocation9], 64, 64, 4
    $region25: #{tpu_custom_call.1} parent=1 // pred_fallthru
      _
    // Predicated region
    $region26: #{tpu_custom_call.1} parent=1 // pred_check
      _
    $region27: #{tpu_custom_call.1} parent=1 // pred_check_branch
      %69 = sbr.rel (0) target = $region29
    $region28: #{tpu_custom_call.1} parent=1 // pred_region
      _
    $region29: #{tpu_custom_call.1} parent=1 // pred_fallthru
      _
    // Predicated region
    $region30: #{tpu_custom_call.1} parent=1 // pred_check
      _
    $region31: #{tpu_custom_call.1} parent=1 // pred_check_branch
      %71 = sbr.rel (0) target = $region33
    $region32: #{tpu_custom_call.1} parent=1 // pred_region
      %s73 = ssub.s32 1024, 1024
      %74 = vsyncadd [#allocation9], %s73
      %s75 = sshll.u32 [#allocation10], 4
      %s76 = int_to_ptr.vmem [resolvable:$true] %s75
      %81 = dma.hbm_to_vmem [thread:$0]  %s7, 1024, %s76, [#allocation9], 64, 64, 4
    $region33: #{tpu_custom_call.1} parent=1 // pred_fallthru
      _
    // Predicated region
    $region34: #{tpu_custom_call.1} parent=1 // pred_check
      _
    $region35: #{tpu_custom_call.1} parent=1 // pred_check_branch
      %83 = sbr.rel (0) target = $region37
    $region36: #{tpu_custom_call.1} parent=1 // pred_region
      _
    $region37: #{tpu_custom_call.1} parent=1 // pred_fallthru
      _
    // Predicated region
    $region38: #{tpu_custom_call.1} parent=1 // pred_check
      _
    $region39: #{tpu_custom_call.1} parent=1 // pred_check_branch
      %85 = sbr.rel (0) target = $region41
    $region40: #{tpu_custom_call.1} parent=1 // pred_region
      %86 = dma.done [#allocation3], 448
    $region41: #{tpu_custom_call.1} parent=1 // pred_fallthru
      _
    // Predicated region
    $region42: #{tpu_custom_call.1} parent=1 // pred_check
      _
    $region43: #{tpu_custom_call.1} parent=1 // pred_check_branch
      %88 = sbr.rel (0) target = $region45
    $region44: #{tpu_custom_call.1} parent=1 // pred_region
      %89 = dma.done [#allocation6], 28672
    $region45: #{tpu_custom_call.1} parent=1 // pred_fallthru
      _
    // Predicated region
    $region46: #{tpu_custom_call.1} parent=1 // pred_check
      _
    $region47: #{tpu_custom_call.1} parent=1 // pred_check_branch
      %91 = sbr.rel (0) target = $region49
    $region48: #{tpu_custom_call.1} parent=1 // pred_region
      %92 = dma.done [#allocation6], 8192
    $region49: #{tpu_custom_call.1} parent=1 // pred_fallthru
      _
    // Predicated region
    $region50: #{tpu_custom_call.1} parent=1 // pred_check
      _
    $region51: #{tpu_custom_call.1} parent=1 // pred_check_branch
      %94 = sbr.rel (0) target = $region53
    $region52: #{tpu_custom_call.1} parent=1 // pred_region
      %95 = dma.done [#allocation9], 2048
    $region53: #{tpu_custom_call.1} parent=1 // pred_fallthru
      _
    // Predicated region
    $region54: #{tpu_custom_call.1} parent=1 // pred_check
      _
    $region55: #{tpu_custom_call.1} parent=1 // pred_check_branch
      %97 = sbr.rel (0) target = $region57
    $region56: #{tpu_custom_call.1} parent=1 // pred_region
      %98 = dma.done [#allocation9], 1024
    $region57: #{tpu_custom_call.1} parent=1 // pred_fallthru
      _
    %v100 = vld [vmem:[%s2] sm:$0xf]
    %v101 = vld [vmem:[%s4] sm:$0x3]
    %v102 = vld [vmem:[%s6] sm:$0x1]
    %v103 = vld [vmem:[%s8] sm:$0x1]
    %v104 = vld [vmem:[#allocation2] sm:$0xff]
    %v105 = vld [vmem:[#allocation2 + $0x8] sm:$0xff]
    %v106 = vld [vmem:[#allocation2 + $0x10] sm:$0xff]
    %v107 = vld [vmem:[#allocation2 + $0x18] sm:$0xf]
    %v108 = vld [vmem:[#allocation5] sm:$0xff]
    %v109 = vld [vmem:[#allocation5 + $0x8] sm:$0xff]
    %v110 = vld [vmem:[#allocation5 + $0x10] sm:$0xff]
    %v111 = vld [vmem:[#allocation5 + $0x18] sm:$0xff]
    %v112 = vld [vmem:[#allocation5 + $0x20] sm:$0xff]
    %v113 = vld [vmem:[#allocation5 + $0x28] sm:$0xff]
    %v114 = vld [vmem:[#allocation5 + $0x30] sm:$0xff]
    %v115 = vld [vmem:[#allocation5 + $0x38] sm:$0xff]
    %v116 = vld [vmem:[#allocation5 + $0x40] sm:$0xff]
    %v117 = vld [vmem:[#allocation5 + $0x48] sm:$0xff]
    %v118 = vld [vmem:[#allocation5 + $0x50] sm:$0xff]
    %v119 = vld [vmem:[#allocation5 + $0x58] sm:$0xff]
    %v120 = vld [vmem:[#allocation5 + $0x60] sm:$0xff]
    %v121 = vld [vmem:[#allocation5 + $0x68] sm:$0xff]
    %v122 = vld [vmem:[#allocation5 + $0x70] sm:$0xff]
    %v123 = vld [vmem:[#allocation5 + $0x78] sm:$0xff]
    %v124 = vld [vmem:[#allocation5 + $0x80] sm:$0xff]
    %v125 = vld [vmem:[#allocation5 + $0x88] sm:$0xff]
    %v126 = vld [vmem:[#allocation5 + $0x90] sm:$0xff]
    %v127 = vld [vmem:[#allocation5 + $0x98] sm:$0xff]
    %v128 = vld [vmem:[#allocation5 + $0xa0] sm:$0xff]
    %v129 = vld [vmem:[#allocation5 + $0xa8] sm:$0xff]
    %v130 = vld [vmem:[#allocation5 + $0xb0] sm:$0xff]
    %v131 = vld [vmem:[#allocation5 + $0xb8] sm:$0xff]
    %v132 = vld [vmem:[#allocation5 + $0xc0] sm:$0xff]
    %v133 = vld [vmem:[#allocation5 + $0xc8] sm:$0xff]
    %v134 = vld [vmem:[#allocation5 + $0xd0] sm:$0xff]
    %v135 = vld [vmem:[#allocation5 + $0xd8] sm:$0xff]
    %v136 = vld [vmem:[#allocation5 + $0xe0] sm:$0xff]
    %v137 = vld [vmem:[#allocation5 + $0xe8] sm:$0xff]
    %v138 = vld [vmem:[#allocation5 + $0xf0] sm:$0xff]
    %v139 = vld [vmem:[#allocation5 + $0xf8] sm:$0xff]
    %v140 = vld [vmem:[#allocation5 + $0x100] sm:$0xff]
    %v141 = vld [vmem:[#allocation5 + $0x108] sm:$0xff]
    %v142 = vld [vmem:[#allocation5 + $0x110] sm:$0xff]
    %v143 = vld [vmem:[#allocation5 + $0x118] sm:$0xff]
    %v144 = vld [vmem:[#allocation5 + $0x120] sm:$0xff]
    %v145 = vld [vmem:[#allocation5 + $0x128] sm:$0xff]
    %v146 = vld [vmem:[#allocation5 + $0x130] sm:$0xff]
    %v147 = vld [vmem:[#allocation5 + $0x138] sm:$0xff]
    %v148 = vld [vmem:[#allocation5 + $0x140] sm:$0xff]
    %v149 = vld [vmem:[#allocation5 + $0x148] sm:$0xff]
    %v150 = vld [vmem:[#allocation5 + $0x150] sm:$0xff]
    %v151 = vld [vmem:[#allocation5 + $0x158] sm:$0xff]
    %v152 = vld [vmem:[#allocation5 + $0x160] sm:$0xff]
    %v153 = vld [vmem:[#allocation5 + $0x168] sm:$0xff]
    %v154 = vld [vmem:[#allocation5 + $0x170] sm:$0xff]
    %v155 = vld [vmem:[#allocation5 + $0x178] sm:$0xff]
    %v156 = vld [vmem:[#allocation5 + $0x180] sm:$0xff]
    %v157 = vld [vmem:[#allocation5 + $0x188] sm:$0xff]
    %v158 = vld [vmem:[#allocation5 + $0x190] sm:$0xff]
    %v159 = vld [vmem:[#allocation5 + $0x198] sm:$0xff]
    %v160 = vld [vmem:[#allocation5 + $0x1a0] sm:$0xff]
    %v161 = vld [vmem:[#allocation5 + $0x1a8] sm:$0xff]
    %v162 = vld [vmem:[#allocation5 + $0x1b0] sm:$0xff]
    %v163 = vld [vmem:[#allocation5 + $0x1b8] sm:$0xff]
    %v164 = vld [vmem:[#allocation5 + $0x1c0] sm:$0xff]
    %v165 = vld [vmem:[#allocation5 + $0x1c8] sm:$0xff]
    %v166 = vld [vmem:[#allocation5 + $0x1d0] sm:$0xff]
    %v167 = vld [vmem:[#allocation5 + $0x1d8] sm:$0xff]
    %v168 = vld [vmem:[#allocation5 + $0x1e0] sm:$0xff]
    %v169 = vld [vmem:[#allocation5 + $0x1e8] sm:$0xff]
    %v170 = vld [vmem:[#allocation5 + $0x1f0] sm:$0xff]
    %v171 = vld [vmem:[#allocation5 + $0x1f8] sm:$0xff]
    %v172 = vld [vmem:[#allocation5 + $0x200] sm:$0xff]
    %v173 = vld [vmem:[#allocation5 + $0x208] sm:$0xff]
    %v174 = vld [vmem:[#allocation5 + $0x210] sm:$0xff]
    %v175 = vld [vmem:[#allocation5 + $0x218] sm:$0xff]
    %v176 = vld [vmem:[#allocation5 + $0x220] sm:$0xff]
    %v177 = vld [vmem:[#allocation5 + $0x228] sm:$0xff]
    %v178 = vld [vmem:[#allocation5 + $0x230] sm:$0xff]
    %v179 = vld [vmem:[#allocation5 + $0x238] sm:$0xff]
    %v180 = vld [vmem:[#allocation5 + $0x240] sm:$0xff]
    %v181 = vld [vmem:[#allocation5 + $0x248] sm:$0xff]
    %v182 = vld [vmem:[#allocation5 + $0x250] sm:$0xff]
    %v183 = vld [vmem:[#allocation5 + $0x258] sm:$0xff]
    %v184 = vld [vmem:[#allocation5 + $0x260] sm:$0xff]
    %v185 = vld [vmem:[#allocation5 + $0x268] sm:$0xff]
    %v186 = vld [vmem:[#allocation5 + $0x270] sm:$0xff]
    %v187 = vld [vmem:[#allocation5 + $0x278] sm:$0xff]
    %v188 = vld [vmem:[#allocation5 + $0x280] sm:$0xff]
    %v189 = vld [vmem:[#allocation5 + $0x288] sm:$0xff]
    %v190 = vld [vmem:[#allocation5 + $0x290] sm:$0xff]
    %v191 = vld [vmem:[#allocation5 + $0x298] sm:$0xff]
    %v192 = vld [vmem:[#allocation5 + $0x2a0] sm:$0xff]
    %v193 = vld [vmem:[#allocation5 + $0x2a8] sm:$0xff]
    %v194 = vld [vmem:[#allocation5 + $0x2b0] sm:$0xff]
    %v195 = vld [vmem:[#allocation5 + $0x2b8] sm:$0xff]
    %v196 = vld [vmem:[#allocation5 + $0x2c0] sm:$0xff]
    %v197 = vld [vmem:[#allocation5 + $0x2c8] sm:$0xff]
    %v198 = vld [vmem:[#allocation5 + $0x2d0] sm:$0xff]
    %v199 = vld [vmem:[#allocation5 + $0x2d8] sm:$0xff]
    %v200 = vld [vmem:[#allocation5 + $0x2e0] sm:$0xff]
    %v201 = vld [vmem:[#allocation5 + $0x2e8] sm:$0xff]
    %v202 = vld [vmem:[#allocation5 + $0x2f0] sm:$0xff]
    %v203 = vld [vmem:[#allocation5 + $0x2f8] sm:$0xff]
    %v204 = vld [vmem:[#allocation5 + $0x300] sm:$0xff]
    %v205 = vld [vmem:[#allocation5 + $0x308] sm:$0xff]
    %v206 = vld [vmem:[#allocation5 + $0x310] sm:$0xff]
    %v207 = vld [vmem:[#allocation5 + $0x318] sm:$0xff]
    %v208 = vld [vmem:[#allocation5 + $0x320] sm:$0xff]
    %v209 = vld [vmem:[#allocation5 + $0x328] sm:$0xff]
    %v210 = vld [vmem:[#allocation5 + $0x330] sm:$0xff]
    %v211 = vld [vmem:[#allocation5 + $0x338] sm:$0xff]
    %v212 = vld [vmem:[#allocation5 + $0x340] sm:$0xff]
    %v213 = vld [vmem:[#allocation5 + $0x348] sm:$0xff]
    %v214 = vld [vmem:[#allocation5 + $0x350] sm:$0xff]
    %v215 = vld [vmem:[#allocation5 + $0x358] sm:$0xff]
    %v216 = vld [vmem:[#allocation5 + $0x360] sm:$0xff]
    %v217 = vld [vmem:[#allocation5 + $0x368] sm:$0xff]
    %v218 = vld [vmem:[#allocation5 + $0x370] sm:$0xff]
    %v219 = vld [vmem:[#allocation5 + $0x378] sm:$0xff]
    %v220 = vld [vmem:[#allocation5 + $0x380] sm:$0xff]
    %v221 = vld [vmem:[#allocation5 + $0x388] sm:$0xff]
    %v222 = vld [vmem:[#allocation5 + $0x390] sm:$0xff]
    %v223 = vld [vmem:[#allocation5 + $0x398] sm:$0xff]
    %v224 = vld [vmem:[#allocation5 + $0x3a0] sm:$0xff]
    %v225 = vld [vmem:[#allocation5 + $0x3a8] sm:$0xff]
    %v226 = vld [vmem:[#allocation5 + $0x3b0] sm:$0xff]
    %v227 = vld [vmem:[#allocation5 + $0x3b8] sm:$0xff]
    %v228 = vld [vmem:[#allocation5 + $0x3c0] sm:$0xff]
    %v229 = vld [vmem:[#allocation5 + $0x3c8] sm:$0xff]
    %v230 = vld [vmem:[#allocation5 + $0x3d0] sm:$0xff]
    %v231 = vld [vmem:[#allocation5 + $0x3d8] sm:$0xff]
    %v232 = vld [vmem:[#allocation5 + $0x3e0] sm:$0xff]
    %v233 = vld [vmem:[#allocation5 + $0x3e8] sm:$0xff]
    %v234 = vld [vmem:[#allocation5 + $0x3f0] sm:$0xff]
    %v235 = vld [vmem:[#allocation5 + $0x3f8] sm:$0xff]
    %v236 = vld [vmem:[#allocation5 + $0x400] sm:$0xff]
    %v237 = vld [vmem:[#allocation5 + $0x408] sm:$0xff]
    %v238 = vld [vmem:[#allocation5 + $0x410] sm:$0xff]
    %v239 = vld [vmem:[#allocation5 + $0x418] sm:$0xff]
    %v240 = vld [vmem:[#allocation5 + $0x420] sm:$0xff]
    %v241 = vld [vmem:[#allocation5 + $0x428] sm:$0xff]
    %v242 = vld [vmem:[#allocation5 + $0x430] sm:$0xff]
    %v243 = vld [vmem:[#allocation5 + $0x438] sm:$0xff]
    %v244 = vld [vmem:[#allocation5 + $0x440] sm:$0xff]
    %v245 = vld [vmem:[#allocation5 + $0x448] sm:$0xff]
    %v246 = vld [vmem:[#allocation5 + $0x450] sm:$0xff]
    %v247 = vld [vmem:[#allocation5 + $0x458] sm:$0xff]
    %v248 = vld [vmem:[#allocation5 + $0x460] sm:$0xff]
    %v249 = vld [vmem:[#allocation5 + $0x468] sm:$0xff]
    %v250 = vld [vmem:[#allocation5 + $0x470] sm:$0xff]
    %v251 = vld [vmem:[#allocation5 + $0x478] sm:$0xff]
    %v252 = vld [vmem:[#allocation5 + $0x480] sm:$0xff]
    %v253 = vld [vmem:[#allocation5 + $0x488] sm:$0xff]
    %v254 = vld [vmem:[#allocation5 + $0x490] sm:$0xff]
    %v255 = vld [vmem:[#allocation5 + $0x498] sm:$0xff]
    %v256 = vld [vmem:[#allocation5 + $0x4a0] sm:$0xff]
    %v257 = vld [vmem:[#allocation5 + $0x4a8] sm:$0xff]
    %v258 = vld [vmem:[#allocation5 + $0x4b0] sm:$0xff]
    %v259 = vld [vmem:[#allocation5 + $0x4b8] sm:$0xff]
    %v260 = vld [vmem:[#allocation5 + $0x4c0] sm:$0xff]
    %v261 = vld [vmem:[#allocation5 + $0x4c8] sm:$0xff]
    %v262 = vld [vmem:[#allocation5 + $0x4d0] sm:$0xff]
    %v263 = vld [vmem:[#allocation5 + $0x4d8] sm:$0xff]
    %v264 = vld [vmem:[#allocation5 + $0x4e0] sm:$0xff]
    %v265 = vld [vmem:[#allocation5 + $0x4e8] sm:$0xff]
    %v266 = vld [vmem:[#allocation5 + $0x4f0] sm:$0xff]
    %v267 = vld [vmem:[#allocation5 + $0x4f8] sm:$0xff]
    %v268 = vld [vmem:[#allocation5 + $0x500] sm:$0xff]
    %v269 = vld [vmem:[#allocation5 + $0x508] sm:$0xff]
    %v270 = vld [vmem:[#allocation5 + $0x510] sm:$0xff]
    %v271 = vld [vmem:[#allocation5 + $0x518] sm:$0xff]
    %v272 = vld [vmem:[#allocation5 + $0x520] sm:$0xff]
    %v273 = vld [vmem:[#allocation5 + $0x528] sm:$0xff]
    %v274 = vld [vmem:[#allocation5 + $0x530] sm:$0xff]
    %v275 = vld [vmem:[#allocation5 + $0x538] sm:$0xff]
    %v276 = vld [vmem:[#allocation5 + $0x540] sm:$0xff]
    %v277 = vld [vmem:[#allocation5 + $0x548] sm:$0xff]
    %v278 = vld [vmem:[#allocation5 + $0x550] sm:$0xff]
    %v279 = vld [vmem:[#allocation5 + $0x558] sm:$0xff]
    %v280 = vld [vmem:[#allocation5 + $0x560] sm:$0xff]
    %v281 = vld [vmem:[#allocation5 + $0x568] sm:$0xff]
    %v282 = vld [vmem:[#allocation5 + $0x570] sm:$0xff]
    %v283 = vld [vmem:[#allocation5 + $0x578] sm:$0xff]
    %v284 = vld [vmem:[#allocation5 + $0x580] sm:$0xff]
    %v285 = vld [vmem:[#allocation5 + $0x588] sm:$0xff]
    %v286 = vld [vmem:[#allocation5 + $0x590] sm:$0xff]
    %v287 = vld [vmem:[#allocation5 + $0x598] sm:$0xff]
    %v288 = vld [vmem:[#allocation5 + $0x5a0] sm:$0xff]
    %v289 = vld [vmem:[#allocation5 + $0x5a8] sm:$0xff]
    %v290 = vld [vmem:[#allocation5 + $0x5b0] sm:$0xff]
    %v291 = vld [vmem:[#allocation5 + $0x5b8] sm:$0xff]
    %v292 = vld [vmem:[#allocation5 + $0x5c0] sm:$0xff]
    %v293 = vld [vmem:[#allocation5 + $0x5c8] sm:$0xff]
    %v294 = vld [vmem:[#allocation5 + $0x5d0] sm:$0xff]
    %v295 = vld [vmem:[#allocation5 + $0x5d8] sm:$0xff]
    %v296 = vld [vmem:[#allocation5 + $0x5e0] sm:$0xff]
    %v297 = vld [vmem:[#allocation5 + $0x5e8] sm:$0xff]
    %v298 = vld [vmem:[#allocation5 + $0x5f0] sm:$0xff]
    %v299 = vld [vmem:[#allocation5 + $0x5f8] sm:$0xff]
    %v300 = vld [vmem:[#allocation5 + $0x600] sm:$0xff]
    %v301 = vld [vmem:[#allocation5 + $0x608] sm:$0xff]
    %v302 = vld [vmem:[#allocation5 + $0x610] sm:$0xff]
    %v303 = vld [vmem:[#allocation5 + $0x618] sm:$0xff]
    %v304 = vld [vmem:[#allocation5 + $0x620] sm:$0xff]
    %v305 = vld [vmem:[#allocation5 + $0x628] sm:$0xff]
    %v306 = vld [vmem:[#allocation5 + $0x630] sm:$0xff]
    %v307 = vld [vmem:[#allocation5 + $0x638] sm:$0xff]
    %v308 = vld [vmem:[#allocation5 + $0x640] sm:$0xff]
    %v309 = vld [vmem:[#allocation5 + $0x648] sm:$0xff]
    %v310 = vld [vmem:[#allocation5 + $0x650] sm:$0xff]
    %v311 = vld [vmem:[#allocation5 + $0x658] sm:$0xff]
    %v312 = vld [vmem:[#allocation5 + $0x660] sm:$0xff]
    %v313 = vld [vmem:[#allocation5 + $0x668] sm:$0xff]
    %v314 = vld [vmem:[#allocation5 + $0x670] sm:$0xff]
    %v315 = vld [vmem:[#allocation5 + $0x678] sm:$0xff]
    %v316 = vld [vmem:[#allocation5 + $0x680] sm:$0xff]
    %v317 = vld [vmem:[#allocation5 + $0x688] sm:$0xff]
    %v318 = vld [vmem:[#allocation5 + $0x690] sm:$0xff]
    %v319 = vld [vmem:[#allocation5 + $0x698] sm:$0xff]
    %v320 = vld [vmem:[#allocation5 + $0x6a0] sm:$0xff]
    %v321 = vld [vmem:[#allocation5 + $0x6a8] sm:$0xff]
    %v322 = vld [vmem:[#allocation5 + $0x6b0] sm:$0xff]
    %v323 = vld [vmem:[#allocation5 + $0x6b8] sm:$0xff]
    %v324 = vld [vmem:[#allocation5 + $0x6c0] sm:$0xff]
    %v325 = vld [vmem:[#allocation5 + $0x6c8] sm:$0xff]
    %v326 = vld [vmem:[#allocation5 + $0x6d0] sm:$0xff]
    %v327 = vld [vmem:[#allocation5 + $0x6d8] sm:$0xff]
    %v328 = vld [vmem:[#allocation5 + $0x6e0] sm:$0xff]
    %v329 = vld [vmem:[#allocation5 + $0x6e8] sm:$0xff]
    %v330 = vld [vmem:[#allocation5 + $0x6f0] sm:$0xff]
    %v331 = vld [vmem:[#allocation5 + $0x6f8] sm:$0xff]
    %v333 = vlaneseq
    %v334 = vshrl.u32 %v333, 7
    %v335 = vsub.s32 0, %v334
    %v336 = vrot.slane %v100, %v335
    %v337 = vlaneseq
    %v338 = vshrl.u32 %v337, 7
    %v339 = vsub.s32 1, %v338
    %v340 = vrot.slane %v100, %v339
    %v341 = vlaneseq
    %v342 = vshrl.u32 %v341, 7
    %v343 = vsub.s32 2, %v342
    %v344 = vrot.slane %v100, %v343
    %v345 = vlaneseq
    %v346 = vshrl.u32 %v345, 7
    %v347 = vsub.s32 3, %v346
    %v348 = vrot.slane %v100, %v347
    %v357 = vunpack.c.l.b16 %v104
    %v358 = vunpack.c.h.b16 %v104
    %v359 = vunpack.c.l.b16 %v105
    %v360 = vunpack.c.h.b16 %v105
    %v361 = vunpack.c.l.b16 %v106
    %v362 = vunpack.c.h.b16 %v106
    %v363 = vunpack.c.l.b16 %v107
    %v364 = vpack.c.b16 %v357, %v357
    %v365 = vpack.c.b16 %v358, %v358
    %v366 = vpack.c.b16 %v359, %v359
    %v367 = vpack.c.b16 %v360, %v360
    %v368 = vpack.c.b16 %v361, %v361
    %v369 = vpack.c.b16 %v362, %v362
    %v370 = vpack.c.b16 %v363, %v363
    %v602 = vunpack.c.l.b16 %v108
    %v603 = vunpack.c.h.b16 %v108
    %v604 = vunpack.c.l.b16 %v109
    %v605 = vunpack.c.h.b16 %v109
    %v606 = vunpack.c.l.b16 %v110
    %v607 = vunpack.c.h.b16 %v110
    %v608 = vunpack.c.l.b16 %v111
    %v609 = vunpack.c.h.b16 %v111
    %v610 = vunpack.c.l.b16 %v112
    %v611 = vunpack.c.h.b16 %v112
    %v612 = vunpack.c.l.b16 %v113
    %v613 = vunpack.c.h.b16 %v113
    %v614 = vunpack.c.l.b16 %v114
    %v615 = vunpack.c.h.b16 %v114
    %v616 = vunpack.c.l.b16 %v115
    %v617 = vunpack.c.h.b16 %v115
    %v618 = vunpack.c.l.b16 %v116
    %v619 = vunpack.c.h.b16 %v116
    %v620 = vunpack.c.l.b16 %v117
    %v621 = vunpack.c.h.b16 %v117
    %v622 = vunpack.c.l.b16 %v118
    %v623 = vunpack.c.h.b16 %v118
    %v624 = vunpack.c.l.b16 %v119
    %v625 = vunpack.c.h.b16 %v119
    %v626 = vunpack.c.l.b16 %v120
    %v627 = vunpack.c.h.b16 %v120
    %v628 = vunpack.c.l.b16 %v121
    %v629 = vunpack.c.h.b16 %v121
    %v630 = vunpack.c.l.b16 %v122
    %v631 = vunpack.c.h.b16 %v122
    %v632 = vunpack.c.l.b16 %v123
    %v633 = vunpack.c.h.b16 %v123
    %v634 = vunpack.c.l.b16 %v124
    %v635 = vunpack.c.h.b16 %v124
    %v636 = vunpack.c.l.b16 %v125
    %v637 = vunpack.c.h.b16 %v125
    %v638 = vunpack.c.l.b16 %v126
    %v639 = vunpack.c.h.b16 %v126
    %v640 = vunpack.c.l.b16 %v127
    %v641 = vunpack.c.h.b16 %v127
    %v642 = vunpack.c.l.b16 %v128
    %v643 = vunpack.c.h.b16 %v128
    %v644 = vunpack.c.l.b16 %v129
    %v645 = vunpack.c.h.b16 %v129
    %v646 = vunpack.c.l.b16 %v130
    %v647 = vunpack.c.h.b16 %v130
    %v648 = vunpack.c.l.b16 %v131
    %v649 = vunpack.c.h.b16 %v131
    %v650 = vunpack.c.l.b16 %v132
    %v651 = vunpack.c.h.b16 %v132
    %v652 = vunpack.c.l.b16 %v133
    %v653 = vunpack.c.h.b16 %v133
    %v654 = vunpack.c.l.b16 %v134
    %v655 = vunpack.c.h.b16 %v134
    %v656 = vunpack.c.l.b16 %v135
    %v657 = vunpack.c.h.b16 %v135
    %v658 = vunpack.c.l.b16 %v136
    %v659 = vunpack.c.h.b16 %v136
    %v660 = vunpack.c.l.b16 %v137
    %v661 = vunpack.c.h.b16 %v137
    %v662 = vunpack.c.l.b16 %v138
    %v663 = vunpack.c.h.b16 %v138
    %v664 = vunpack.c.l.b16 %v139
    %v665 = vunpack.c.h.b16 %v139
    %v666 = vunpack.c.l.b16 %v140
    %v667 = vunpack.c.h.b16 %v140
    %v668 = vunpack.c.l.b16 %v141
    %v669 = vunpack.c.h.b16 %v141
    %v670 = vunpack.c.l.b16 %v142
    %v671 = vunpack.c.h.b16 %v142
    %v672 = vunpack.c.l.b16 %v143
    %v673 = vunpack.c.h.b16 %v143
    %v674 = vunpack.c.l.b16 %v144
    %v675 = vunpack.c.h.b16 %v144
    %v676 = vunpack.c.l.b16 %v145
    %v677 = vunpack.c.h.b16 %v145
    %v678 = vunpack.c.l.b16 %v146
    %v679 = vunpack.c.h.b16 %v146
    %v680 = vunpack.c.l.b16 %v147
    %v681 = vunpack.c.h.b16 %v147
    %v682 = vunpack.c.l.b16 %v148
    %v683 = vunpack.c.h.b16 %v148
    %v684 = vunpack.c.l.b16 %v149
    %v685 = vunpack.c.h.b16 %v149
    %v686 = vunpack.c.l.b16 %v150
    %v687 = vunpack.c.h.b16 %v150
    %v688 = vunpack.c.l.b16 %v151
    %v689 = vunpack.c.h.b16 %v151
    %v690 = vunpack.c.l.b16 %v152
    %v691 = vunpack.c.h.b16 %v152
    %v692 = vunpack.c.l.b16 %v153
    %v693 = vunpack.c.h.b16 %v153
    %v694 = vunpack.c.l.b16 %v154
    %v695 = vunpack.c.h.b16 %v154
    %v696 = vunpack.c.l.b16 %v155
    %v697 = vunpack.c.h.b16 %v155
    %v698 = vunpack.c.l.b16 %v156
    %v699 = vunpack.c.h.b16 %v156
    %v700 = vunpack.c.l.b16 %v157
    %v701 = vunpack.c.h.b16 %v157
    %v702 = vunpack.c.l.b16 %v158
    %v703 = vunpack.c.h.b16 %v158
    %v704 = vunpack.c.l.b16 %v159
    %v705 = vunpack.c.h.b16 %v159
    %v706 = vunpack.c.l.b16 %v160
    %v707 = vunpack.c.h.b16 %v160
    %v708 = vunpack.c.l.b16 %v161
    %v709 = vunpack.c.h.b16 %v161
    %v710 = vunpack.c.l.b16 %v162
    %v711 = vunpack.c.h.b16 %v162
    %v712 = vunpack.c.l.b16 %v163
    %v713 = vunpack.c.h.b16 %v163
    %v714 = vunpack.c.l.b16 %v164
    %v715 = vunpack.c.h.b16 %v164
    %v716 = vunpack.c.l.b16 %v165
    %v717 = vunpack.c.h.b16 %v165
    %v718 = vunpack.c.l.b16 %v166
    %v719 = vunpack.c.h.b16 %v166
    %v720 = vunpack.c.l.b16 %v167
    %v721 = vunpack.c.h.b16 %v167
    %v722 = vunpack.c.l.b16 %v168
    %v723 = vunpack.c.h.b16 %v168
    %v724 = vunpack.c.l.b16 %v169
    %v725 = vunpack.c.h.b16 %v169
    %v726 = vunpack.c.l.b16 %v170
    %v727 = vunpack.c.h.b16 %v170
    %v728 = vunpack.c.l.b16 %v171
    %v729 = vunpack.c.h.b16 %v171
    %v730 = vunpack.c.l.b16 %v172
    %v731 = vunpack.c.h.b16 %v172
    %v732 = vunpack.c.l.b16 %v173
    %v733 = vunpack.c.h.b16 %v173
    %v734 = vunpack.c.l.b16 %v174
    %v735 = vunpack.c.h.b16 %v174
    %v736 = vunpack.c.l.b16 %v175
    %v737 = vunpack.c.h.b16 %v175
    %v738 = vunpack.c.l.b16 %v176
    %v739 = vunpack.c.h.b16 %v176
    %v740 = vunpack.c.l.b16 %v177
    %v741 = vunpack.c.h.b16 %v177
    %v742 = vunpack.c.l.b16 %v178
    %v743 = vunpack.c.h.b16 %v178
    %v744 = vunpack.c.l.b16 %v179
    %v745 = vunpack.c.h.b16 %v179
    %v746 = vunpack.c.l.b16 %v180
    %v747 = vunpack.c.h.b16 %v180
    %v748 = vunpack.c.l.b16 %v181
    %v749 = vunpack.c.h.b16 %v181
    %v750 = vunpack.c.l.b16 %v182
    %v751 = vunpack.c.h.b16 %v182
    %v752 = vunpack.c.l.b16 %v183
    %v753 = vunpack.c.h.b16 %v183
    %v754 = vunpack.c.l.b16 %v184
    %v755 = vunpack.c.h.b16 %v184
    %v756 = vunpack.c.l.b16 %v185
    %v757 = vunpack.c.h.b16 %v185
    %v758 = vunpack.c.l.b16 %v186
    %v759 = vunpack.c.h.b16 %v186
    %v760 = vunpack.c.l.b16 %v187
    %v761 = vunpack.c.h.b16 %v187
    %v762 = vunpack.c.l.b16 %v188
    %v763 = vunpack.c.h.b16 %v188
    %v764 = vunpack.c.l.b16 %v189
    %v765 = vunpack.c.h.b16 %v189
    %v766 = vunpack.c.l.b16 %v190
    %v767 = vunpack.c.h.b16 %v190
    %v768 = vunpack.c.l.b16 %v191
    %v769 = vunpack.c.h.b16 %v191
    %v770 = vunpack.c.l.b16 %v192
    %v771 = vunpack.c.h.b16 %v192
    %v772 = vunpack.c.l.b16 %v193
    %v773 = vunpack.c.h.b16 %v193
    %v774 = vunpack.c.l.b16 %v194
    %v775 = vunpack.c.h.b16 %v194
    %v776 = vunpack.c.l.b16 %v195
    %v777 = vunpack.c.h.b16 %v195
    %v778 = vunpack.c.l.b16 %v196
    %v779 = vunpack.c.h.b16 %v196
    %v780 = vunpack.c.l.b16 %v197
    %v781 = vunpack.c.h.b16 %v197
    %v782 = vunpack.c.l.b16 %v198
    %v783 = vunpack.c.h.b16 %v198
    %v784 = vunpack.c.l.b16 %v199
    %v785 = vunpack.c.h.b16 %v199
    %v786 = vunpack.c.l.b16 %v200
    %v787 = vunpack.c.h.b16 %v200
    %v788 = vunpack.c.l.b16 %v201
    %v789 = vunpack.c.h.b16 %v201
    %v790 = vunpack.c.l.b16 %v202
    %v791 = vunpack.c.h.b16 %v202
    %v792 = vunpack.c.l.b16 %v203
    %v793 = vunpack.c.h.b16 %v203
    %v794 = vunpack.c.l.b16 %v204
    %v795 = vunpack.c.h.b16 %v204
    %v796 = vunpack.c.l.b16 %v205
    %v797 = vunpack.c.h.b16 %v205
    %v798 = vunpack.c.l.b16 %v206
    %v799 = vunpack.c.h.b16 %v206
    %v800 = vunpack.c.l.b16 %v207
    %v801 = vunpack.c.h.b16 %v207
    %v802 = vunpack.c.l.b16 %v208
    %v803 = vunpack.c.h.b16 %v208
    %v804 = vunpack.c.l.b16 %v209
    %v805 = vunpack.c.h.b16 %v209
    %v806 = vunpack.c.l.b16 %v210
    %v807 = vunpack.c.h.b16 %v210
    %v808 = vunpack.c.l.b16 %v211
    %v809 = vunpack.c.h.b16 %v211
    %v810 = vunpack.c.l.b16 %v212
    %v811 = vunpack.c.h.b16 %v212
    %v812 = vunpack.c.l.b16 %v213
    %v813 = vunpack.c.h.b16 %v213
    %v814 = vunpack.c.l.b16 %v214
    %v815 = vunpack.c.h.b16 %v214
    %v816 = vunpack.c.l.b16 %v215
    %v817 = vunpack.c.h.b16 %v215
    %v818 = vunpack.c.l.b16 %v216
    %v819 = vunpack.c.h.b16 %v216
    %v820 = vunpack.c.l.b16 %v217
    %v821 = vunpack.c.h.b16 %v217
    %v822 = vunpack.c.l.b16 %v218
    %v823 = vunpack.c.h.b16 %v218
    %v824 = vunpack.c.l.b16 %v219
    %v825 = vunpack.c.h.b16 %v219
    %v826 = vunpack.c.l.b16 %v220
    %v827 = vunpack.c.h.b16 %v220
    %v828 = vunpack.c.l.b16 %v221
    %v829 = vunpack.c.h.b16 %v221
    %v830 = vunpack.c.l.b16 %v222
    %v831 = vunpack.c.h.b16 %v222
    %v832 = vunpack.c.l.b16 %v223
    %v833 = vunpack.c.h.b16 %v223
    %v834 = vunpack.c.l.b16 %v224
    %v835 = vunpack.c.h.b16 %v224
    %v836 = vunpack.c.l.b16 %v225
    %v837 = vunpack.c.h.b16 %v225
    %v838 = vunpack.c.l.b16 %v226
    %v839 = vunpack.c.h.b16 %v226
    %v840 = vunpack.c.l.b16 %v227
    %v841 = vunpack.c.h.b16 %v227
    %v842 = vunpack.c.l.b16 %v228
    %v843 = vunpack.c.h.b16 %v228
    %v844 = vunpack.c.l.b16 %v229
    %v845 = vunpack.c.h.b16 %v229
    %v846 = vunpack.c.l.b16 %v230
    %v847 = vunpack.c.h.b16 %v230
    %v848 = vunpack.c.l.b16 %v231
    %v849 = vunpack.c.h.b16 %v231
    %v850 = vunpack.c.l.b16 %v232
    %v851 = vunpack.c.h.b16 %v232
    %v852 = vunpack.c.l.b16 %v233
    %v853 = vunpack.c.h.b16 %v233
    %v854 = vunpack.c.l.b16 %v234
    %v855 = vunpack.c.h.b16 %v234
    %v856 = vunpack.c.l.b16 %v235
    %v857 = vunpack.c.h.b16 %v235
    %v858 = vunpack.c.l.b16 %v236
    %v859 = vunpack.c.h.b16 %v236
    %v860 = vunpack.c.l.b16 %v237
    %v861 = vunpack.c.h.b16 %v237
    %v862 = vunpack.c.l.b16 %v238
    %v863 = vunpack.c.h.b16 %v238
    %v864 = vunpack.c.l.b16 %v239
    %v865 = vunpack.c.h.b16 %v239
    %v866 = vunpack.c.l.b16 %v240
    %v867 = vunpack.c.h.b16 %v240
    %v868 = vunpack.c.l.b16 %v241
    %v869 = vunpack.c.h.b16 %v241
    %v870 = vunpack.c.l.b16 %v242
    %v871 = vunpack.c.h.b16 %v242
    %v872 = vunpack.c.l.b16 %v243
    %v873 = vunpack.c.h.b16 %v243
    %v874 = vunpack.c.l.b16 %v244
    %v875 = vunpack.c.h.b16 %v244
    %v876 = vunpack.c.l.b16 %v245
    %v877 = vunpack.c.h.b16 %v245
    %v878 = vunpack.c.l.b16 %v246
    %v879 = vunpack.c.h.b16 %v246
    %v880 = vunpack.c.l.b16 %v247
    %v881 = vunpack.c.h.b16 %v247
    %v882 = vunpack.c.l.b16 %v248
    %v883 = vunpack.c.h.b16 %v248
    %v884 = vunpack.c.l.b16 %v249
    %v885 = vunpack.c.h.b16 %v249
    %v886 = vunpack.c.l.b16 %v250
    %v887 = vunpack.c.h.b16 %v250
    %v888 = vunpack.c.l.b16 %v251
    %v889 = vunpack.c.h.b16 %v251
    %v890 = vunpack.c.l.b16 %v252
    %v891 = vunpack.c.h.b16 %v252
    %v892 = vunpack.c.l.b16 %v253
    %v893 = vunpack.c.h.b16 %v253
    %v894 = vunpack.c.l.b16 %v254
    %v895 = vunpack.c.h.b16 %v254
    %v896 = vunpack.c.l.b16 %v255
    %v897 = vunpack.c.h.b16 %v255
    %v898 = vunpack.c.l.b16 %v256
    %v899 = vunpack.c.h.b16 %v256
    %v900 = vunpack.c.l.b16 %v257
    %v901 = vunpack.c.h.b16 %v257
    %v902 = vunpack.c.l.b16 %v258
    %v903 = vunpack.c.h.b16 %v258
    %v904 = vunpack.c.l.b16 %v259
    %v905 = vunpack.c.h.b16 %v259
    %v906 = vunpack.c.l.b16 %v260
    %v907 = vunpack.c.h.b16 %v260
    %v908 = vunpack.c.l.b16 %v261
    %v909 = vunpack.c.h.b16 %v261
    %v910 = vunpack.c.l.b16 %v262
    %v911 = vunpack.c.h.b16 %v262
    %v912 = vunpack.c.l.b16 %v263
    %v913 = vunpack.c.h.b16 %v263
    %v914 = vunpack.c.l.b16 %v264
    %v915 = vunpack.c.h.b16 %v264
    %v916 = vunpack.c.l.b16 %v265
    %v917 = vunpack.c.h.b16 %v265
    %v918 = vunpack.c.l.b16 %v266
    %v919 = vunpack.c.h.b16 %v266
    %v920 = vunpack.c.l.b16 %v267
    %v921 = vunpack.c.h.b16 %v267
    %v922 = vunpack.c.l.b16 %v268
    %v923 = vunpack.c.h.b16 %v268
    %v924 = vunpack.c.l.b16 %v269
    %v925 = vunpack.c.h.b16 %v269
    %v926 = vunpack.c.l.b16 %v270
    %v927 = vunpack.c.h.b16 %v270
    %v928 = vunpack.c.l.b16 %v271
    %v929 = vunpack.c.h.b16 %v271
    %v930 = vunpack.c.l.b16 %v272
    %v931 = vunpack.c.h.b16 %v272
    %v932 = vunpack.c.l.b16 %v273
    %v933 = vunpack.c.h.b16 %v273
    %v934 = vunpack.c.l.b16 %v274
    %v935 = vunpack.c.h.b16 %v274
    %v936 = vunpack.c.l.b16 %v275
    %v937 = vunpack.c.h.b16 %v275
    %v938 = vunpack.c.l.b16 %v276
    %v939 = vunpack.c.h.b16 %v276
    %v940 = vunpack.c.l.b16 %v277
    %v941 = vunpack.c.h.b16 %v277
    %v942 = vunpack.c.l.b16 %v278
    %v943 = vunpack.c.h.b16 %v278
    %v944 = vunpack.c.l.b16 %v279
    %v945 = vunpack.c.h.b16 %v279
    %v946 = vunpack.c.l.b16 %v280
    %v947 = vunpack.c.h.b16 %v280
    %v948 = vunpack.c.l.b16 %v281
    %v949 = vunpack.c.h.b16 %v281
    %v950 = vunpack.c.l.b16 %v282
    %v951 = vunpack.c.h.b16 %v282
    %v952 = vunpack.c.l.b16 %v283
    %v953 = vunpack.c.h.b16 %v283
    %v954 = vunpack.c.l.b16 %v284
    %v955 = vunpack.c.h.b16 %v284
    %v956 = vunpack.c.l.b16 %v285
    %v957 = vunpack.c.h.b16 %v285
    %v958 = vunpack.c.l.b16 %v286
    %v959 = vunpack.c.h.b16 %v286
    %v960 = vunpack.c.l.b16 %v287
    %v961 = vunpack.c.h.b16 %v287
    %v962 = vunpack.c.l.b16 %v288
    %v963 = vunpack.c.h.b16 %v288
    %v964 = vunpack.c.l.b16 %v289
    %v965 = vunpack.c.h.b16 %v289
    %v966 = vunpack.c.l.b16 %v290
    %v967 = vunpack.c.h.b16 %v290
    %v968 = vunpack.c.l.b16 %v291
    %v969 = vunpack.c.h.b16 %v291
    %v970 = vunpack.c.l.b16 %v292
    %v971 = vunpack.c.h.b16 %v292
    %v972 = vunpack.c.l.b16 %v293
    %v973 = vunpack.c.h.b16 %v293
    %v974 = vunpack.c.l.b16 %v294
    %v975 = vunpack.c.h.b16 %v294
    %v976 = vunpack.c.l.b16 %v295
    %v977 = vunpack.c.h.b16 %v295
    %v978 = vunpack.c.l.b16 %v296
    %v979 = vunpack.c.h.b16 %v296
    %v980 = vunpack.c.l.b16 %v297
    %v981 = vunpack.c.h.b16 %v297
    %v982 = vunpack.c.l.b16 %v298
    %v983 = vunpack.c.h.b16 %v298
    %v984 = vunpack.c.l.b16 %v299
    %v985 = vunpack.c.h.b16 %v299
    %v986 = vunpack.c.l.b16 %v300
    %v987 = vunpack.c.h.b16 %v300
    %v988 = vunpack.c.l.b16 %v301
    %v989 = vunpack.c.h.b16 %v301
    %v990 = vunpack.c.l.b16 %v302
    %v991 = vunpack.c.h.b16 %v302
    %v992 = vunpack.c.l.b16 %v303
    %v993 = vunpack.c.h.b16 %v303
    %v994 = vunpack.c.l.b16 %v304
    %v995 = vunpack.c.h.b16 %v304
    %v996 = vunpack.c.l.b16 %v305
    %v997 = vunpack.c.h.b16 %v305
    %v998 = vunpack.c.l.b16 %v306
    %v999 = vunpack.c.h.b16 %v306
    %v1000 = vunpack.c.l.b16 %v307
    %v1001 = vunpack.c.h.b16 %v307
    %v1002 = vunpack.c.l.b16 %v308
    %v1003 = vunpack.c.h.b16 %v308
    %v1004 = vunpack.c.l.b16 %v309
    %v1005 = vunpack.c.h.b16 %v309
    %v1006 = vunpack.c.l.b16 %v310
    %v1007 = vunpack.c.h.b16 %v310
    %v1008 = vunpack.c.l.b16 %v311
    %v1009 = vunpack.c.h.b16 %v311
    %v1010 = vunpack.c.l.b16 %v312
    %v1011 = vunpack.c.h.b16 %v312
    %v1012 = vunpack.c.l.b16 %v313
    %v1013 = vunpack.c.h.b16 %v313
    %v1014 = vunpack.c.l.b16 %v314
    %v1015 = vunpack.c.h.b16 %v314
    %v1016 = vunpack.c.l.b16 %v315
    %v1017 = vunpack.c.h.b16 %v315
    %v1018 = vunpack.c.l.b16 %v316
    %v1019 = vunpack.c.h.b16 %v316
    %v1020 = vunpack.c.l.b16 %v317
    %v1021 = vunpack.c.h.b16 %v317
    %v1022 = vunpack.c.l.b16 %v318
    %v1023 = vunpack.c.h.b16 %v318
    %v1024 = vunpack.c.l.b16 %v319
    %v1025 = vunpack.c.h.b16 %v319
    %v1026 = vunpack.c.l.b16 %v320
    %v1027 = vunpack.c.h.b16 %v320
    %v1028 = vunpack.c.l.b16 %v321
    %v1029 = vunpack.c.h.b16 %v321
    %v1030 = vunpack.c.l.b16 %v322
    %v1031 = vunpack.c.h.b16 %v322
    %v1032 = vunpack.c.l.b16 %v323
    %v1033 = vunpack.c.h.b16 %v323
    %v1034 = vunpack.c.l.b16 %v324
    %v1035 = vunpack.c.h.b16 %v324
    %v1036 = vunpack.c.l.b16 %v325
    %v1037 = vunpack.c.h.b16 %v325
    %v1038 = vunpack.c.l.b16 %v326
    %v1039 = vunpack.c.h.b16 %v326
    %v1040 = vunpack.c.l.b16 %v327
    %v1041 = vunpack.c.h.b16 %v327
    %v1042 = vunpack.c.l.b16 %v328
    %v1043 = vunpack.c.h.b16 %v328
    %v1044 = vunpack.c.l.b16 %v329
    %v1045 = vunpack.c.h.b16 %v329
    %v1046 = vunpack.c.l.b16 %v330
    %v1047 = vunpack.c.h.b16 %v330
    %v1048 = vunpack.c.l.b16 %v331
    %v1049 = vunpack.c.h.b16 %v331
    %v1050 = vpack.c.b16 %v606, %v602
    %v1051 = vpack.c.b16 %v607, %v603
    %v1052 = vpack.c.b16 %v608, %v604
    %v1053 = vpack.c.b16 %v609, %v605
    %v1054 = vpack.c.b16 %v614, %v610
    %v1055 = vpack.c.b16 %v615, %v611
    %v1056 = vpack.c.b16 %v616, %v612
    %v1057 = vpack.c.b16 %v617, %v613
    %v1058 = vpack.c.b16 %v622, %v618
    %v1059 = vpack.c.b16 %v623, %v619
    %v1060 = vpack.c.b16 %v624, %v620
    %v1061 = vpack.c.b16 %v625, %v621
    %v1062 = vpack.c.b16 %v630, %v626
    %v1063 = vpack.c.b16 %v631, %v627
    %v1064 = vpack.c.b16 %v632, %v628
    %v1065 = vpack.c.b16 %v633, %v629
    %v1066 = vpack.c.b16 %v638, %v634
    %v1067 = vpack.c.b16 %v639, %v635
    %v1068 = vpack.c.b16 %v640, %v636
    %v1069 = vpack.c.b16 %v641, %v637
    %v1070 = vpack.c.b16 %v646, %v642
    %v1071 = vpack.c.b16 %v647, %v643
    %v1072 = vpack.c.b16 %v648, %v644
    %v1073 = vpack.c.b16 %v649, %v645
    %v1074 = vpack.c.b16 %v654, %v650
    %v1075 = vpack.c.b16 %v655, %v651
    %v1076 = vpack.c.b16 %v656, %v652
    %v1077 = vpack.c.b16 %v657, %v653
    %v1078 = vpack.c.b16 %v662, %v658
    %v1079 = vpack.c.b16 %v663, %v659
    %v1080 = vpack.c.b16 %v664, %v660
    %v1081 = vpack.c.b16 %v665, %v661
    %v1082 = vpack.c.b16 %v670, %v666
    %v1083 = vpack.c.b16 %v671, %v667
    %v1084 = vpack.c.b16 %v672, %v668
    %v1085 = vpack.c.b16 %v673, %v669
    %v1086 = vpack.c.b16 %v678, %v674
    %v1087 = vpack.c.b16 %v679, %v675
    %v1088 = vpack.c.b16 %v680, %v676
    %v1089 = vpack.c.b16 %v681, %v677
    %v1090 = vpack.c.b16 %v686, %v682
    %v1091 = vpack.c.b16 %v687, %v683
    %v1092 = vpack.c.b16 %v688, %v684
    %v1093 = vpack.c.b16 %v689, %v685
    %v1094 = vpack.c.b16 %v694, %v690
    %v1095 = vpack.c.b16 %v695, %v691
    %v1096 = vpack.c.b16 %v696, %v692
    %v1097 = vpack.c.b16 %v697, %v693
    %v1098 = vpack.c.b16 %v702, %v698
    %v1099 = vpack.c.b16 %v703, %v699
    %v1100 = vpack.c.b16 %v704, %v700
    %v1101 = vpack.c.b16 %v705, %v701
    %v1102 = vpack.c.b16 %v710, %v706
    %v1103 = vpack.c.b16 %v711, %v707
    %v1104 = vpack.c.b16 %v712, %v708
    %v1105 = vpack.c.b16 %v713, %v709
    %v1106 = vpack.c.b16 %v718, %v714
    %v1107 = vpack.c.b16 %v719, %v715
    %v1108 = vpack.c.b16 %v720, %v716
    %v1109 = vpack.c.b16 %v721, %v717
    %v1110 = vpack.c.b16 %v726, %v722
    %v1111 = vpack.c.b16 %v727, %v723
    %v1112 = vpack.c.b16 %v728, %v724
    %v1113 = vpack.c.b16 %v729, %v725
    %v1114 = vpack.c.b16 %v734, %v730
    %v1115 = vpack.c.b16 %v735, %v731
    %v1116 = vpack.c.b16 %v736, %v732
    %v1117 = vpack.c.b16 %v737, %v733
    %v1118 = vpack.c.b16 %v742, %v738
    %v1119 = vpack.c.b16 %v743, %v739
    %v1120 = vpack.c.b16 %v744, %v740
    %v1121 = vpack.c.b16 %v745, %v741
    %v1122 = vpack.c.b16 %v750, %v746
    %v1123 = vpack.c.b16 %v751, %v747
    %v1124 = vpack.c.b16 %v752, %v748
    %v1125 = vpack.c.b16 %v753, %v749
    %v1126 = vpack.c.b16 %v758, %v754
    %v1127 = vpack.c.b16 %v759, %v755
    %v1128 = vpack.c.b16 %v760, %v756
    %v1129 = vpack.c.b16 %v761, %v757
    %v1130 = vpack.c.b16 %v766, %v762
    %v1131 = vpack.c.b16 %v767, %v763
    %v1132 = vpack.c.b16 %v768, %v764
    %v1133 = vpack.c.b16 %v769, %v765
    %v1134 = vpack.c.b16 %v774, %v770
    %v1135 = vpack.c.b16 %v775, %v771
    %v1136 = vpack.c.b16 %v776, %v772
    %v1137 = vpack.c.b16 %v777, %v773
    %v1138 = vpack.c.b16 %v782, %v778
    %v1139 = vpack.c.b16 %v783, %v779
    %v1140 = vpack.c.b16 %v784, %v780
    %v1141 = vpack.c.b16 %v785, %v781
    %v1142 = vpack.c.b16 %v790, %v786
    %v1143 = vpack.c.b16 %v791, %v787
    %v1144 = vpack.c.b16 %v792, %v788
    %v1145 = vpack.c.b16 %v793, %v789
    %v1146 = vpack.c.b16 %v798, %v794
    %v1147 = vpack.c.b16 %v799, %v795
    %v1148 = vpack.c.b16 %v800, %v796
    %v1149 = vpack.c.b16 %v801, %v797
    %v1150 = vpack.c.b16 %v806, %v802
    %v1151 = vpack.c.b16 %v807, %v803
    %v1152 = vpack.c.b16 %v808, %v804
    %v1153 = vpack.c.b16 %v809, %v805
    %v1154 = vpack.c.b16 %v814, %v810
    %v1155 = vpack.c.b16 %v815, %v811
    %v1156 = vpack.c.b16 %v816, %v812
    %v1157 = vpack.c.b16 %v817, %v813
    %v1158 = vpack.c.b16 %v822, %v818
    %v1159 = vpack.c.b16 %v823, %v819
    %v1160 = vpack.c.b16 %v824, %v820
    %v1161 = vpack.c.b16 %v825, %v821
    %v1162 = vpack.c.b16 %v830, %v826
    %v1163 = vpack.c.b16 %v831, %v827
    %v1164 = vpack.c.b16 %v832, %v828
    %v1165 = vpack.c.b16 %v833, %v829
    %v1166 = vpack.c.b16 %v838, %v834
    %v1167 = vpack.c.b16 %v839, %v835
    %v1168 = vpack.c.b16 %v840, %v836
    %v1169 = vpack.c.b16 %v841, %v837
    %v1170 = vpack.c.b16 %v846, %v842
    %v1171 = vpack.c.b16 %v847, %v843
    %v1172 = vpack.c.b16 %v848, %v844
    %v1173 = vpack.c.b16 %v849, %v845
    %v1174 = vpack.c.b16 %v854, %v850
    %v1175 = vpack.c.b16 %v855, %v851
    %v1176 = vpack.c.b16 %v856, %v852
    %v1177 = vpack.c.b16 %v857, %v853
    %v1178 = vpack.c.b16 %v862, %v858
    %v1179 = vpack.c.b16 %v863, %v859
    %v1180 = vpack.c.b16 %v864, %v860
    %v1181 = vpack.c.b16 %v865, %v861
    %v1182 = vpack.c.b16 %v870, %v866
    %v1183 = vpack.c.b16 %v871, %v867
    %v1184 = vpack.c.b16 %v872, %v868
    %v1185 = vpack.c.b16 %v873, %v869
    %v1186 = vpack.c.b16 %v878, %v874
    %v1187 = vpack.c.b16 %v879, %v875
    %v1188 = vpack.c.b16 %v880, %v876
    %v1189 = vpack.c.b16 %v881, %v877
    %v1190 = vpack.c.b16 %v886, %v882
    %v1191 = vpack.c.b16 %v887, %v883
    %v1192 = vpack.c.b16 %v888, %v884
    %v1193 = vpack.c.b16 %v889, %v885
    %v1194 = vpack.c.b16 %v894, %v890
    %v1195 = vpack.c.b16 %v895, %v891
    %v1196 = vpack.c.b16 %v896, %v892
    %v1197 = vpack.c.b16 %v897, %v893
    %v1198 = vpack.c.b16 %v902, %v898
    %v1199 = vpack.c.b16 %v903, %v899
    %v1200 = vpack.c.b16 %v904, %v900
    %v1201 = vpack.c.b16 %v905, %v901
    %v1202 = vpack.c.b16 %v910, %v906
    %v1203 = vpack.c.b16 %v911, %v907
    %v1204 = vpack.c.b16 %v912, %v908
    %v1205 = vpack.c.b16 %v913, %v909
    %v1206 = vpack.c.b16 %v918, %v914
    %v1207 = vpack.c.b16 %v919, %v915
    %v1208 = vpack.c.b16 %v920, %v916
    %v1209 = vpack.c.b16 %v921, %v917
    %v1210 = vpack.c.b16 %v926, %v922
    %v1211 = vpack.c.b16 %v927, %v923
    %v1212 = vpack.c.b16 %v928, %v924
    %v1213 = vpack.c.b16 %v929, %v925
    %v1214 = vpack.c.b16 %v934, %v930
    %v1215 = vpack.c.b16 %v935, %v931
    %v1216 = vpack.c.b16 %v936, %v932
    %v1217 = vpack.c.b16 %v937, %v933
    %v1218 = vpack.c.b16 %v942, %v938
    %v1219 = vpack.c.b16 %v943, %v939
    %v1220 = vpack.c.b16 %v944, %v940
    %v1221 = vpack.c.b16 %v945, %v941
    %v1222 = vpack.c.b16 %v950, %v946
    %v1223 = vpack.c.b16 %v951, %v947
    %v1224 = vpack.c.b16 %v952, %v948
    %v1225 = vpack.c.b16 %v953, %v949
    %v1226 = vpack.c.b16 %v958, %v954
    %v1227 = vpack.c.b16 %v959, %v955
    %v1228 = vpack.c.b16 %v960, %v956
    %v1229 = vpack.c.b16 %v961, %v957
    %v1230 = vpack.c.b16 %v966, %v962
    %v1231 = vpack.c.b16 %v967, %v963
    %v1232 = vpack.c.b16 %v968, %v964
    %v1233 = vpack.c.b16 %v969, %v965
    %v1234 = vpack.c.b16 %v974, %v970
    %v1235 = vpack.c.b16 %v975, %v971
    %v1236 = vpack.c.b16 %v976, %v972
    %v1237 = vpack.c.b16 %v977, %v973
    %v1238 = vpack.c.b16 %v982, %v978
    %v1239 = vpack.c.b16 %v983, %v979
    %v1240 = vpack.c.b16 %v984, %v980
    %v1241 = vpack.c.b16 %v985, %v981
    %v1242 = vpack.c.b16 %v990, %v986
    %v1243 = vpack.c.b16 %v991, %v987
    %v1244 = vpack.c.b16 %v992, %v988
    %v1245 = vpack.c.b16 %v993, %v989
    %v1246 = vpack.c.b16 %v998, %v994
    %v1247 = vpack.c.b16 %v999, %v995
    %v1248 = vpack.c.b16 %v1000, %v996
    %v1249 = vpack.c.b16 %v1001, %v997
    %v1250 = vpack.c.b16 %v1006, %v1002
    %v1251 = vpack.c.b16 %v1007, %v1003
    %v1252 = vpack.c.b16 %v1008, %v1004
    %v1253 = vpack.c.b16 %v1009, %v1005
    %v1254 = vpack.c.b16 %v1014, %v1010
    %v1255 = vpack.c.b16 %v1015, %v1011
    %v1256 = vpack.c.b16 %v1016, %v1012
    %v1257 = vpack.c.b16 %v1017, %v1013
    %v1258 = vpack.c.b16 %v1022, %v1018
    %v1259 = vpack.c.b16 %v1023, %v1019
    %v1260 = vpack.c.b16 %v1024, %v1020
    %v1261 = vpack.c.b16 %v1025, %v1021
    %v1262 = vpack.c.b16 %v1030, %v1026
    %v1263 = vpack.c.b16 %v1031, %v1027
    %v1264 = vpack.c.b16 %v1032, %v1028
    %v1265 = vpack.c.b16 %v1033, %v1029
    %v1266 = vpack.c.b16 %v1038, %v1034
    %v1267 = vpack.c.b16 %v1039, %v1035
    %v1268 = vpack.c.b16 %v1040, %v1036
    %v1269 = vpack.c.b16 %v1041, %v1037
    %v1270 = vpack.c.b16 %v1046, %v1042
    %v1271 = vpack.c.b16 %v1047, %v1043
    %v1272 = vpack.c.b16 %v1048, %v1044
    %v1273 = vpack.c.b16 %v1049, %v1045
    %1498 = vmatprep.subr.bf16.mxu0 %v1051
    %1499 = vmatpush1.bf16.msra.mxu0 %v1050
    %1500 = vmatprep.subr.bf16.mxu0 %v1055
    %1501 = vmatpush1.bf16.msra.mxu0 %v1054
    %1502 = vmatprep.subr.bf16.mxu0 %v1059
    %1503 = vmatpush1.bf16.msra.mxu0 %v1058
    %1504 = vmatprep.subr.bf16.mxu0 %v1063
    %1505 = vmatpush1.bf16.msra.mxu0 %v1062
    %1506 = vmatprep.subr.bf16.mxu0 %v1067
    %1507 = vmatpush1.bf16.msra.mxu0 %v1066
    %1508 = vmatprep.subr.bf16.mxu0 %v1071
    %1509 = vmatpush1.bf16.msra.mxu0 %v1070
    %1510 = vmatprep.subr.bf16.mxu0 %v1075
    %1511 = vmatpush1.bf16.msra.mxu0 %v1074
    %1512 = vmatprep.subr.bf16.mxu0 %v1079
    %1513 = vmatpush1.bf16.msra.mxu0 %v1078
    %1514 = vmatprep.subr.bf16.mxu0 %v1083
    %1515 = vmatpush1.bf16.msra.mxu0 %v1082
    %1516 = vmatprep.subr.bf16.mxu0 %v1087
    %1517 = vmatpush1.bf16.msra.mxu0 %v1086
    %1518 = vmatprep.subr.bf16.mxu0 %v1091
    %1519 = vmatpush1.bf16.msra.mxu0 %v1090
    %1520 = vmatprep.subr.bf16.mxu0 %v1095
    %1521 = vmatpush1.bf16.msra.mxu0 %v1094
    %1522 = vmatprep.subr.bf16.mxu0 %v1099
    %1523 = vmatpush1.bf16.msra.mxu0 %v1098
    %1524 = vmatprep.subr.bf16.mxu0 %v1103
    %1525 = vmatpush1.bf16.msra.mxu0 %v1102
    %1526 = vmatprep.subr.bf16.mxu0 %v1107
    %1527 = vmatpush1.bf16.msra.mxu0 %v1106
    %1528 = vmatprep.subr.bf16.mxu0 %v1111
    %1529 = vmatpush1.bf16.msra.mxu0 %v1110
    %1530 = vmatprep.mubr.bf16.mxu0 %v365
    %1531 = vmatmul.mubr.bf16.gmra.mrb[0].mxu0 %v364
    %v1532 = vpop.f32.mrb[0].mxu0
    %v1533 = vadd.f32 %v336, %v1532
    %v1534 = vpop.f32.mrb[0].mxu0
    %v1535 = vadd.f32 %v340, %v1534
    %v1536 = vpop.f32.mrb[0].mxu0
    %v1537 = vpop.f32.mrb[0].mxu0
    %1538 = vdwg.mxu0
    %1539 = vmatprep.subr.bf16.mxu0 %v1115
    %1540 = vmatpush1.bf16.msra.mxu0 %v1114
    %1541 = vmatprep.subr.bf16.mxu0 %v1119
    %1542 = vmatpush1.bf16.msra.mxu0 %v1118
    %1543 = vmatprep.subr.bf16.mxu0 %v1123
    %1544 = vmatpush1.bf16.msra.mxu0 %v1122
    %1545 = vmatprep.subr.bf16.mxu0 %v1127
    %1546 = vmatpush1.bf16.msra.mxu0 %v1126
    %1547 = vmatprep.subr.bf16.mxu0 %v1131
    %1548 = vmatpush1.bf16.msra.mxu0 %v1130
    %1549 = vmatprep.subr.bf16.mxu0 %v1135
    %1550 = vmatpush1.bf16.msra.mxu0 %v1134
    %1551 = vmatprep.subr.bf16.mxu0 %v1139
    %1552 = vmatpush1.bf16.msra.mxu0 %v1138
    %1553 = vmatprep.subr.bf16.mxu0 %v1143
    %1554 = vmatpush1.bf16.msra.mxu0 %v1142
    %1555 = vmatprep.subr.bf16.mxu0 %v1147
    %1556 = vmatpush1.bf16.msra.mxu0 %v1146
    %1557 = vmatprep.subr.bf16.mxu0 %v1151
    %1558 = vmatpush1.bf16.msra.mxu0 %v1150
    %1559 = vmatprep.subr.bf16.mxu0 %v1155
    %1560 = vmatpush1.bf16.msra.mxu0 %v1154
    %1561 = vmatprep.subr.bf16.mxu0 %v1159
    %1562 = vmatpush1.bf16.msra.mxu0 %v1158
    %1563 = vmatprep.subr.bf16.mxu0 %v1163
    %1564 = vmatpush1.bf16.msra.mxu0 %v1162
    %1565 = vmatprep.subr.bf16.mxu0 %v1167
    %1566 = vmatpush1.bf16.msra.mxu0 %v1166
    %1567 = vmatprep.subr.bf16.mxu0 %v1171
    %1568 = vmatpush1.bf16.msra.mxu0 %v1170
    %1569 = vmatprep.subr.bf16.mxu0 %v1175
    %1570 = vmatpush1.bf16.msra.mxu0 %v1174
    %1571 = vmatprep.mubr.bf16.mxu0 %v367
    %1572 = vmatmul.mubr.bf16.gmra.mrb[0].mxu0 %v366
    %v1573 = vpop.f32.mrb[0].mxu0
    %v1574 = vadd.f32 %v1533, %v1573
    %v1575 = vpop.f32.mrb[0].mxu0
    %v1576 = vadd.f32 %v1535, %v1575
    %v1577 = vpop.f32.mrb[0].mxu0
    %v1578 = vpop.f32.mrb[0].mxu0
    %1579 = vdwg.mxu0
    %1580 = vmatprep.subr.bf16.mxu0 %v1179
    %1581 = vmatpush1.bf16.msra.mxu0 %v1178
    %1582 = vmatprep.subr.bf16.mxu0 %v1183
    %1583 = vmatpush1.bf16.msra.mxu0 %v1182
    %1584 = vmatprep.subr.bf16.mxu0 %v1187
    %1585 = vmatpush1.bf16.msra.mxu0 %v1186
    %1586 = vmatprep.subr.bf16.mxu0 %v1191
    %1587 = vmatpush1.bf16.msra.mxu0 %v1190
    %1588 = vmatprep.subr.bf16.mxu0 %v1195
    %1589 = vmatpush1.bf16.msra.mxu0 %v1194
    %1590 = vmatprep.subr.bf16.mxu0 %v1199
    %1591 = vmatpush1.bf16.msra.mxu0 %v1198
    %1592 = vmatprep.subr.bf16.mxu0 %v1203
    %1593 = vmatpush1.bf16.msra.mxu0 %v1202
    %1594 = vmatprep.subr.bf16.mxu0 %v1207
    %1595 = vmatpush1.bf16.msra.mxu0 %v1206
    %1596 = vmatprep.subr.bf16.mxu0 %v1211
    %1597 = vmatpush1.bf16.msra.mxu0 %v1210
    %1598 = vmatprep.subr.bf16.mxu0 %v1215
    %1599 = vmatpush1.bf16.msra.mxu0 %v1214
    %1600 = vmatprep.subr.bf16.mxu0 %v1219
    %1601 = vmatpush1.bf16.msra.mxu0 %v1218
    %1602 = vmatprep.subr.bf16.mxu0 %v1223
    %1603 = vmatpush1.bf16.msra.mxu0 %v1222
    %1604 = vmatprep.subr.bf16.mxu0 %v1227
    %1605 = vmatpush1.bf16.msra.mxu0 %v1226
    %1606 = vmatprep.subr.bf16.mxu0 %v1231
    %1607 = vmatpush1.bf16.msra.mxu0 %v1230
    %1608 = vmatprep.subr.bf16.mxu0 %v1235
    %1609 = vmatpush1.bf16.msra.mxu0 %v1234
    %1610 = vmatprep.subr.bf16.mxu0 %v1239
    %1611 = vmatpush1.bf16.msra.mxu0 %v1238
    %1612 = vmatprep.mubr.bf16.mxu0 %v369
    %1613 = vmatmul.mubr.bf16.gmra.mrb[0].mxu0 %v368
    %v1614 = vpop.f32.mrb[0].mxu0
    %v1615 = vadd.f32 %v1574, %v1614
    %v1616 = vpop.f32.mrb[0].mxu0
    %v1617 = vadd.f32 %v1576, %v1616
    %v1618 = vpop.f32.mrb[0].mxu0
    %v1619 = vpop.f32.mrb[0].mxu0
    %1620 = vdwg.mxu0
    %1621 = vmatprep.subr.bf16.mxu0 %v1243
    %1622 = vmatpush1.bf16.msra.mxu0 %v1242
    %1623 = vmatprep.subr.bf16.mxu0 %v1247
    %1624 = vmatpush1.bf16.msra.mxu0 %v1246
    %1625 = vmatprep.subr.bf16.mxu0 %v1251
    %1626 = vmatpush1.bf16.msra.mxu0 %v1250
    %1627 = vmatprep.subr.bf16.mxu0 %v1255
    %1628 = vmatpush1.bf16.msra.mxu0 %v1254
    %1629 = vmatprep.subr.bf16.mxu0 %v1259
    %1630 = vmatpush1.bf16.msra.mxu0 %v1258
    %1631 = vmatprep.subr.bf16.mxu0 %v1263
    %1632 = vmatpush1.bf16.msra.mxu0 %v1262
    %1633 = vmatprep.subr.bf16.mxu0 %v1267
    %1634 = vmatpush1.bf16.msra.mxu0 %v1266
    %1635 = vmatprep.subr.bf16.mxu0 %v1271
    %1636 = vmatpush1.bf16.msra.mxu0 %v1270
    %1637 = vmatprep.subr.bf16.mxu0 0
    %1638 = vmatpush1.bf16.msra.mxu0 0
    %1639 = vmatprep.subr.bf16.mxu0 0
    %1640 = vmatpush1.bf16.msra.mxu0 0
    %1641 = vmatprep.subr.bf16.mxu0 0
    %1642 = vmatpush1.bf16.msra.mxu0 0
    %1643 = vmatprep.subr.bf16.mxu0 0
    %1644 = vmatpush1.bf16.msra.mxu0 0
    %1645 = vmatprep.subr.bf16.mxu0 0
    %1646 = vmatpush1.bf16.msra.mxu0 0
    %1647 = vmatprep.subr.bf16.mxu0 0
    %1648 = vmatpush1.bf16.msra.mxu0 0
    %1649 = vmatprep.subr.bf16.mxu0 0
    %1650 = vmatpush1.bf16.msra.mxu0 0
    %1651 = vmatprep.subr.bf16.mxu0 0
    %1652 = vmatpush1.bf16.msra.mxu0 0
    %1653 = vmatprep.mubr.bf16.mxu0 0
    %1654 = vmatmul.mubr.bf16.gmra.mrb[0].mxu0 %v370
    %v1655 = vpop.f32.mrb[0].mxu0
    %v1656 = vadd.f32 %v1615, %v1655
    %v1657 = vpop.f32.mrb[0].mxu0
    %v1658 = vadd.f32 %v1617, %v1657
    %v1659 = vpop.f32.mrb[0].mxu0
    %v1660 = vpop.f32.mrb[0].mxu0
    %1661 = vdwg.mxu0
    %1662 = vmatprep.subr.bf16.mxu0 %v1053
    %1663 = vmatpush1.bf16.msra.mxu0 %v1052
    %1664 = vmatprep.subr.bf16.mxu0 %v1057
    %1665 = vmatpush1.bf16.msra.mxu0 %v1056
    %1666 = vmatprep.subr.bf16.mxu0 %v1061
    %1667 = vmatpush1.bf16.msra.mxu0 %v1060
    %1668 = vmatprep.subr.bf16.mxu0 %v1065
    %1669 = vmatpush1.bf16.msra.mxu0 %v1064
    %1670 = vmatprep.subr.bf16.mxu0 %v1069
    %1671 = vmatpush1.bf16.msra.mxu0 %v1068
    %1672 = vmatprep.subr.bf16.mxu0 %v1073
    %1673 = vmatpush1.bf16.msra.mxu0 %v1072
    %1674 = vmatprep.subr.bf16.mxu0 %v1077
    %1675 = vmatpush1.bf16.msra.mxu0 %v1076
    %1676 = vmatprep.subr.bf16.mxu0 %v1081
    %1677 = vmatpush1.bf16.msra.mxu0 %v1080
    %1678 = vmatprep.subr.bf16.mxu0 %v1085
    %1679 = vmatpush1.bf16.msra.mxu0 %v1084
    %1680 = vmatprep.subr.bf16.mxu0 %v1089
    %1681 = vmatpush1.bf16.msra.mxu0 %v1088
    %1682 = vmatprep.subr.bf16.mxu0 %v1093
    %1683 = vmatpush1.bf16.msra.mxu0 %v1092
    %1684 = vmatprep.subr.bf16.mxu0 %v1097
    %1685 = vmatpush1.bf16.msra.mxu0 %v1096
    %1686 = vmatprep.subr.bf16.mxu0 %v1101
    %1687 = vmatpush1.bf16.msra.mxu0 %v1100
    %1688 = vmatprep.subr.bf16.mxu0 %v1105
    %1689 = vmatpush1.bf16.msra.mxu0 %v1104
    %1690 = vmatprep.subr.bf16.mxu0 %v1109
    %1691 = vmatpush1.bf16.msra.mxu0 %v1108
    %1692 = vmatprep.subr.bf16.mxu0 %v1113
    %1693 = vmatpush1.bf16.msra.mxu0 %v1112
    %1694 = vmatprep.mubr.bf16.mxu0 %v365
    %1695 = vmatmul.mubr.bf16.gmra.mrb[0].mxu0 %v364
    %v1696 = vpop.f32.mrb[0].mxu0
    %v1697 = vadd.f32 %v344, %v1696
    %v1698 = vpop.f32.mrb[0].mxu0
    %v1699 = vadd.f32 %v348, %v1698
    %v1700 = vpop.f32.mrb[0].mxu0
    %v1701 = vpop.f32.mrb[0].mxu0
    %1702 = vdwg.mxu0
    %1703 = vmatprep.subr.bf16.mxu0 %v1117
    %1704 = vmatpush1.bf16.msra.mxu0 %v1116
    %1705 = vmatprep.subr.bf16.mxu0 %v1121
    %1706 = vmatpush1.bf16.msra.mxu0 %v1120
    %1707 = vmatprep.subr.bf16.mxu0 %v1125
    %1708 = vmatpush1.bf16.msra.mxu0 %v1124
    %1709 = vmatprep.subr.bf16.mxu0 %v1129
    %1710 = vmatpush1.bf16.msra.mxu0 %v1128
    %1711 = vmatprep.subr.bf16.mxu0 %v1133
    %1712 = vmatpush1.bf16.msra.mxu0 %v1132
    %1713 = vmatprep.subr.bf16.mxu0 %v1137
    %1714 = vmatpush1.bf16.msra.mxu0 %v1136
    %1715 = vmatprep.subr.bf16.mxu0 %v1141
    %1716 = vmatpush1.bf16.msra.mxu0 %v1140
    %1717 = vmatprep.subr.bf16.mxu0 %v1145
    %1718 = vmatpush1.bf16.msra.mxu0 %v1144
    %1719 = vmatprep.subr.bf16.mxu0 %v1149
    %1720 = vmatpush1.bf16.msra.mxu0 %v1148
    %1721 = vmatprep.subr.bf16.mxu0 %v1153
    %1722 = vmatpush1.bf16.msra.mxu0 %v1152
    %1723 = vmatprep.subr.bf16.mxu0 %v1157
    %1724 = vmatpush1.bf16.msra.mxu0 %v1156
    %1725 = vmatprep.subr.bf16.mxu0 %v1161
    %1726 = vmatpush1.bf16.msra.mxu0 %v1160
    %1727 = vmatprep.subr.bf16.mxu0 %v1165
    %1728 = vmatpush1.bf16.msra.mxu0 %v1164
    %1729 = vmatprep.subr.bf16.mxu0 %v1169
    %1730 = vmatpush1.bf16.msra.mxu0 %v1168
    %1731 = vmatprep.subr.bf16.mxu0 %v1173
    %1732 = vmatpush1.bf16.msra.mxu0 %v1172
    %1733 = vmatprep.subr.bf16.mxu0 %v1177
    %1734 = vmatpush1.bf16.msra.mxu0 %v1176
    %1735 = vmatprep.mubr.bf16.mxu0 %v367
    %1736 = vmatmul.mubr.bf16.gmra.mrb[0].mxu0 %v366
    %v1737 = vpop.f32.mrb[0].mxu0
    %v1738 = vadd.f32 %v1697, %v1737
    %v1739 = vpop.f32.mrb[0].mxu0
    %v1740 = vadd.f32 %v1699, %v1739
    %v1741 = vpop.f32.mrb[0].mxu0
    %v1742 = vpop.f32.mrb[0].mxu0
    %1743 = vdwg.mxu0
    %1744 = vmatprep.subr.bf16.mxu0 %v1181
    %1745 = vmatpush1.bf16.msra.mxu0 %v1180
    %1746 = vmatprep.subr.bf16.mxu0 %v1185
    %1747 = vmatpush1.bf16.msra.mxu0 %v1184
    %1748 = vmatprep.subr.bf16.mxu0 %v1189
    %1749 = vmatpush1.bf16.msra.mxu0 %v1188
    %1750 = vmatprep.subr.bf16.mxu0 %v1193
    %1751 = vmatpush1.bf16.msra.mxu0 %v1192
    %1752 = vmatprep.subr.bf16.mxu0 %v1197
    %1753 = vmatpush1.bf16.msra.mxu0 %v1196
    %1754 = vmatprep.subr.bf16.mxu0 %v1201
    %1755 = vmatpush1.bf16.msra.mxu0 %v1200
    %1756 = vmatprep.subr.bf16.mxu0 %v1205
    %1757 = vmatpush1.bf16.msra.mxu0 %v1204
    %1758 = vmatprep.subr.bf16.mxu0 %v1209
    %1759 = vmatpush1.bf16.msra.mxu0 %v1208
    %1760 = vmatprep.subr.bf16.mxu0 %v1213
    %1761 = vmatpush1.bf16.msra.mxu0 %v1212
    %1762 = vmatprep.subr.bf16.mxu0 %v1217
    %1763 = vmatpush1.bf16.msra.mxu0 %v1216
    %1764 = vmatprep.subr.bf16.mxu0 %v1221
    %1765 = vmatpush1.bf16.msra.mxu0 %v1220
    %1766 = vmatprep.subr.bf16.mxu0 %v1225
    %1767 = vmatpush1.bf16.msra.mxu0 %v1224
    %1768 = vmatprep.subr.bf16.mxu0 %v1229
    %1769 = vmatpush1.bf16.msra.mxu0 %v1228
    %1770 = vmatprep.subr.bf16.mxu0 %v1233
    %1771 = vmatpush1.bf16.msra.mxu0 %v1232
    %1772 = vmatprep.subr.bf16.mxu0 %v1237
    %1773 = vmatpush1.bf16.msra.mxu0 %v1236
    %1774 = vmatprep.subr.bf16.mxu0 %v1241
    %1775 = vmatpush1.bf16.msra.mxu0 %v1240
    %1776 = vmatprep.mubr.bf16.mxu0 %v369
    %1777 = vmatmul.mubr.bf16.gmra.mrb[0].mxu0 %v368
    %v1778 = vpop.f32.mrb[0].mxu0
    %v1779 = vadd.f32 %v1738, %v1778
    %v1780 = vpop.f32.mrb[0].mxu0
    %v1781 = vadd.f32 %v1740, %v1780
    %v1782 = vpop.f32.mrb[0].mxu0
    %v1783 = vpop.f32.mrb[0].mxu0
    %1784 = vdwg.mxu0
    %1785 = vmatprep.subr.bf16.mxu0 %v1245
    %1786 = vmatpush1.bf16.msra.mxu0 %v1244
    %1787 = vmatprep.subr.bf16.mxu0 %v1249
    %1788 = vmatpush1.bf16.msra.mxu0 %v1248
    %1789 = vmatprep.subr.bf16.mxu0 %v1253
    %1790 = vmatpush1.bf16.msra.mxu0 %v1252
    %1791 = vmatprep.subr.bf16.mxu0 %v1257
    %1792 = vmatpush1.bf16.msra.mxu0 %v1256
    %1793 = vmatprep.subr.bf16.mxu0 %v1261
    %1794 = vmatpush1.bf16.msra.mxu0 %v1260
    %1795 = vmatprep.subr.bf16.mxu0 %v1265
    %1796 = vmatpush1.bf16.msra.mxu0 %v1264
    %1797 = vmatprep.subr.bf16.mxu0 %v1269
    %1798 = vmatpush1.bf16.msra.mxu0 %v1268
    %1799 = vmatprep.subr.bf16.mxu0 %v1273
    %1800 = vmatpush1.bf16.msra.mxu0 %v1272
    %1801 = vmatprep.subr.bf16.mxu0 0
    %1802 = vmatpush1.bf16.msra.mxu0 0
    %1803 = vmatprep.subr.bf16.mxu0 0
    %1804 = vmatpush1.bf16.msra.mxu0 0
    %1805 = vmatprep.subr.bf16.mxu0 0
    %1806 = vmatpush1.bf16.msra.mxu0 0
    %1807 = vmatprep.subr.bf16.mxu0 0
    %1808 = vmatpush1.bf16.msra.mxu0 0
    %1809 = vmatprep.subr.bf16.mxu0 0
    %1810 = vmatpush1.bf16.msra.mxu0 0
    %1811 = vmatprep.subr.bf16.mxu0 0
    %1812 = vmatpush1.bf16.msra.mxu0 0
    %1813 = vmatprep.subr.bf16.mxu0 0
    %1814 = vmatpush1.bf16.msra.mxu0 0
    %1815 = vmatprep.subr.bf16.mxu0 0
    %1816 = vmatpush1.bf16.msra.mxu0 0
    %1817 = vmatprep.mubr.bf16.mxu0 0
    %1818 = vmatmul.mubr.bf16.gmra.mrb[0].mxu0 %v370
    %v1819 = vpop.f32.mrb[0].mxu0
    %v1820 = vadd.f32 %v1779, %v1819
    %v1821 = vpop.f32.mrb[0].mxu0
    %v1822 = vadd.f32 %v1781, %v1821
    %v1823 = vpop.f32.mrb[0].mxu0
    %v1824 = vpop.f32.mrb[0].mxu0
    %1825 = vdwg.mxu0
    %v1826 = vmax.f32 %v1656, 0.0
    %v1827 = vmax.f32 %v1658, 0.0
    %v1828 = vmax.f32 %v1820, 0.0
    %v1829 = vmax.f32 %v1822, 0.0
    %v1830 = vpack.c.bf16 %v1826, %v1826
    %v1831 = vpack.c.bf16 %v1827, %v1827
    %v1832 = vpack.c.bf16 %v1828, %v1828
    %v1833 = vpack.c.bf16 %v1829, %v1829
    %v1834 = vld [vmem:[#allocation7] sm:$0xff]
    %v1835 = vld [vmem:[#allocation7 + $0x8] sm:$0xff]
    %v1836 = vld [vmem:[#allocation7 + $0x10] sm:$0xff]
    %v1837 = vld [vmem:[#allocation7 + $0x18] sm:$0xff]
    %v1838 = vld [vmem:[#allocation7 + $0x20] sm:$0xff]
    %v1839 = vld [vmem:[#allocation7 + $0x28] sm:$0xff]
    %v1840 = vld [vmem:[#allocation7 + $0x30] sm:$0xff]
    %v1841 = vld [vmem:[#allocation7 + $0x38] sm:$0xff]
    %v1842 = vld [vmem:[#allocation7 + $0x40] sm:$0xff]
    %v1843 = vld [vmem:[#allocation7 + $0x48] sm:$0xff]
    %v1844 = vld [vmem:[#allocation7 + $0x50] sm:$0xff]
    %v1845 = vld [vmem:[#allocation7 + $0x58] sm:$0xff]
    %v1846 = vld [vmem:[#allocation7 + $0x60] sm:$0xff]
    %v1847 = vld [vmem:[#allocation7 + $0x68] sm:$0xff]
    %v1848 = vld [vmem:[#allocation7 + $0x70] sm:$0xff]
    %v1849 = vld [vmem:[#allocation7 + $0x78] sm:$0xff]
    %v1850 = vld [vmem:[#allocation7 + $0x80] sm:$0xff]
    %v1851 = vld [vmem:[#allocation7 + $0x88] sm:$0xff]
    %v1852 = vld [vmem:[#allocation7 + $0x90] sm:$0xff]
    %v1853 = vld [vmem:[#allocation7 + $0x98] sm:$0xff]
    %v1854 = vld [vmem:[#allocation7 + $0xa0] sm:$0xff]
    %v1855 = vld [vmem:[#allocation7 + $0xa8] sm:$0xff]
    %v1856 = vld [vmem:[#allocation7 + $0xb0] sm:$0xff]
    %v1857 = vld [vmem:[#allocation7 + $0xb8] sm:$0xff]
    %v1858 = vld [vmem:[#allocation7 + $0xc0] sm:$0xff]
    %v1859 = vld [vmem:[#allocation7 + $0xc8] sm:$0xff]
    %v1860 = vld [vmem:[#allocation7 + $0xd0] sm:$0xff]
    %v1861 = vld [vmem:[#allocation7 + $0xd8] sm:$0xff]
    %v1862 = vld [vmem:[#allocation7 + $0xe0] sm:$0xff]
    %v1863 = vld [vmem:[#allocation7 + $0xe8] sm:$0xff]
    %v1864 = vld [vmem:[#allocation7 + $0xf0] sm:$0xff]
    %v1865 = vld [vmem:[#allocation7 + $0xf8] sm:$0xff]
    %v1866 = vld [vmem:[#allocation7 + $0x100] sm:$0xff]
    %v1867 = vld [vmem:[#allocation7 + $0x108] sm:$0xff]
    %v1868 = vld [vmem:[#allocation7 + $0x110] sm:$0xff]
    %v1869 = vld [vmem:[#allocation7 + $0x118] sm:$0xff]
    %v1870 = vld [vmem:[#allocation7 + $0x120] sm:$0xff]
    %v1871 = vld [vmem:[#allocation7 + $0x128] sm:$0xff]
    %v1872 = vld [vmem:[#allocation7 + $0x130] sm:$0xff]
    %v1873 = vld [vmem:[#allocation7 + $0x138] sm:$0xff]
    %v1874 = vld [vmem:[#allocation7 + $0x140] sm:$0xff]
    %v1875 = vld [vmem:[#allocation7 + $0x148] sm:$0xff]
    %v1876 = vld [vmem:[#allocation7 + $0x150] sm:$0xff]
    %v1877 = vld [vmem:[#allocation7 + $0x158] sm:$0xff]
    %v1878 = vld [vmem:[#allocation7 + $0x160] sm:$0xff]
    %v1879 = vld [vmem:[#allocation7 + $0x168] sm:$0xff]
    %v1880 = vld [vmem:[#allocation7 + $0x170] sm:$0xff]
    %v1881 = vld [vmem:[#allocation7 + $0x178] sm:$0xff]
    %v1882 = vld [vmem:[#allocation7 + $0x180] sm:$0xff]
    %v1883 = vld [vmem:[#allocation7 + $0x188] sm:$0xff]
    %v1884 = vld [vmem:[#allocation7 + $0x190] sm:$0xff]
    %v1885 = vld [vmem:[#allocation7 + $0x198] sm:$0xff]
    %v1886 = vld [vmem:[#allocation7 + $0x1a0] sm:$0xff]
    %v1887 = vld [vmem:[#allocation7 + $0x1a8] sm:$0xff]
    %v1888 = vld [vmem:[#allocation7 + $0x1b0] sm:$0xff]
    %v1889 = vld [vmem:[#allocation7 + $0x1b8] sm:$0xff]
    %v1890 = vld [vmem:[#allocation7 + $0x1c0] sm:$0xff]
    %v1891 = vld [vmem:[#allocation7 + $0x1c8] sm:$0xff]
    %v1892 = vld [vmem:[#allocation7 + $0x1d0] sm:$0xff]
    %v1893 = vld [vmem:[#allocation7 + $0x1d8] sm:$0xff]
    %v1894 = vld [vmem:[#allocation7 + $0x1e0] sm:$0xff]
    %v1895 = vld [vmem:[#allocation7 + $0x1e8] sm:$0xff]
    %v1896 = vld [vmem:[#allocation7 + $0x1f0] sm:$0xff]
    %v1897 = vld [vmem:[#allocation7 + $0x1f8] sm:$0xff]
    %v1899 = vlaneseq
    %v1900 = vshrl.u32 %v1899, 7
    %v1901 = vsub.s32 0, %v1900
    %v1902 = vrot.slane %v101, %v1901
    %v1903 = vlaneseq
    %v1904 = vshrl.u32 %v1903, 7
    %v1905 = vsub.s32 1, %v1904
    %v1906 = vrot.slane %v101, %v1905
    %v1973 = vunpack.c.l.b16 %v1834
    %v1974 = vunpack.c.h.b16 %v1834
    %v1975 = vunpack.c.l.b16 %v1835
    %v1976 = vunpack.c.h.b16 %v1835
    %v1977 = vunpack.c.l.b16 %v1836
    %v1978 = vunpack.c.h.b16 %v1836
    %v1979 = vunpack.c.l.b16 %v1837
    %v1980 = vunpack.c.h.b16 %v1837
    %v1981 = vunpack.c.l.b16 %v1838
    %v1982 = vunpack.c.h.b16 %v1838
    %v1983 = vunpack.c.l.b16 %v1839
    %v1984 = vunpack.c.h.b16 %v1839
    %v1985 = vunpack.c.l.b16 %v1840
    %v1986 = vunpack.c.h.b16 %v1840
    %v1987 = vunpack.c.l.b16 %v1841
    %v1988 = vunpack.c.h.b16 %v1841
    %v1989 = vunpack.c.l.b16 %v1842
    %v1990 = vunpack.c.h.b16 %v1842
    %v1991 = vunpack.c.l.b16 %v1843
    %v1992 = vunpack.c.h.b16 %v1843
    %v1993 = vunpack.c.l.b16 %v1844
    %v1994 = vunpack.c.h.b16 %v1844
    %v1995 = vunpack.c.l.b16 %v1845
    %v1996 = vunpack.c.h.b16 %v1845
    %v1997 = vunpack.c.l.b16 %v1846
    %v1998 = vunpack.c.h.b16 %v1846
    %v1999 = vunpack.c.l.b16 %v1847
    %v2000 = vunpack.c.h.b16 %v1847
    %v2001 = vunpack.c.l.b16 %v1848
    %v2002 = vunpack.c.h.b16 %v1848
    %v2003 = vunpack.c.l.b16 %v1849
    %v2004 = vunpack.c.h.b16 %v1849
    %v2005 = vunpack.c.l.b16 %v1850
    %v2006 = vunpack.c.h.b16 %v1850
    %v2007 = vunpack.c.l.b16 %v1851
    %v2008 = vunpack.c.h.b16 %v1851
    %v2009 = vunpack.c.l.b16 %v1852
    %v2010 = vunpack.c.h.b16 %v1852
    %v2011 = vunpack.c.l.b16 %v1853
    %v2012 = vunpack.c.h.b16 %v1853
    %v2013 = vunpack.c.l.b16 %v1854
    %v2014 = vunpack.c.h.b16 %v1854
    %v2015 = vunpack.c.l.b16 %v1855
    %v2016 = vunpack.c.h.b16 %v1855
    %v2017 = vunpack.c.l.b16 %v1856
    %v2018 = vunpack.c.h.b16 %v1856
    %v2019 = vunpack.c.l.b16 %v1857
    %v2020 = vunpack.c.h.b16 %v1857
    %v2021 = vunpack.c.l.b16 %v1858
    %v2022 = vunpack.c.h.b16 %v1858
    %v2023 = vunpack.c.l.b16 %v1859
    %v2024 = vunpack.c.h.b16 %v1859
    %v2025 = vunpack.c.l.b16 %v1860
    %v2026 = vunpack.c.h.b16 %v1860
    %v2027 = vunpack.c.l.b16 %v1861
    %v2028 = vunpack.c.h.b16 %v1861
    %v2029 = vunpack.c.l.b16 %v1862
    %v2030 = vunpack.c.h.b16 %v1862
    %v2031 = vunpack.c.l.b16 %v1863
    %v2032 = vunpack.c.h.b16 %v1863
    %v2033 = vunpack.c.l.b16 %v1864
    %v2034 = vunpack.c.h.b16 %v1864
    %v2035 = vunpack.c.l.b16 %v1865
    %v2036 = vunpack.c.h.b16 %v1865
    %v2037 = vunpack.c.l.b16 %v1866
    %v2038 = vunpack.c.h.b16 %v1866
    %v2039 = vunpack.c.l.b16 %v1867
    %v2040 = vunpack.c.h.b16 %v1867
    %v2041 = vunpack.c.l.b16 %v1868
    %v2042 = vunpack.c.h.b16 %v1868
    %v2043 = vunpack.c.l.b16 %v1869
    %v2044 = vunpack.c.h.b16 %v1869
    %v2045 = vunpack.c.l.b16 %v1870
    %v2046 = vunpack.c.h.b16 %v1870
    %v2047 = vunpack.c.l.b16 %v1871
    %v2048 = vunpack.c.h.b16 %v1871
    %v2049 = vunpack.c.l.b16 %v1872
    %v2050 = vunpack.c.h.b16 %v1872
    %v2051 = vunpack.c.l.b16 %v1873
    %v2052 = vunpack.c.h.b16 %v1873
    %v2053 = vunpack.c.l.b16 %v1874
    %v2054 = vunpack.c.h.b16 %v1874
    %v2055 = vunpack.c.l.b16 %v1875
    %v2056 = vunpack.c.h.b16 %v1875
    %v2057 = vunpack.c.l.b16 %v1876
    %v2058 = vunpack.c.h.b16 %v1876
    %v2059 = vunpack.c.l.b16 %v1877
    %v2060 = vunpack.c.h.b16 %v1877
    %v2061 = vunpack.c.l.b16 %v1878
    %v2062 = vunpack.c.h.b16 %v1878
    %v2063 = vunpack.c.l.b16 %v1879
    %v2064 = vunpack.c.h.b16 %v1879
    %v2065 = vunpack.c.l.b16 %v1880
    %v2066 = vunpack.c.h.b16 %v1880
    %v2067 = vunpack.c.l.b16 %v1881
    %v2068 = vunpack.c.h.b16 %v1881
    %v2069 = vunpack.c.l.b16 %v1882
    %v2070 = vunpack.c.h.b16 %v1882
    %v2071 = vunpack.c.l.b16 %v1883
    %v2072 = vunpack.c.h.b16 %v1883
    %v2073 = vunpack.c.l.b16 %v1884
    %v2074 = vunpack.c.h.b16 %v1884
    %v2075 = vunpack.c.l.b16 %v1885
    %v2076 = vunpack.c.h.b16 %v1885
    %v2077 = vunpack.c.l.b16 %v1886
    %v2078 = vunpack.c.h.b16 %v1886
    %v2079 = vunpack.c.l.b16 %v1887
    %v2080 = vunpack.c.h.b16 %v1887
    %v2081 = vunpack.c.l.b16 %v1888
    %v2082 = vunpack.c.h.b16 %v1888
    %v2083 = vunpack.c.l.b16 %v1889
    %v2084 = vunpack.c.h.b16 %v1889
    %v2085 = vunpack.c.l.b16 %v1890
    %v2086 = vunpack.c.h.b16 %v1890
    %v2087 = vunpack.c.l.b16 %v1891
    %v2088 = vunpack.c.h.b16 %v1891
    %v2089 = vunpack.c.l.b16 %v1892
    %v2090 = vunpack.c.h.b16 %v1892
    %v2091 = vunpack.c.l.b16 %v1893
    %v2092 = vunpack.c.h.b16 %v1893
    %v2093 = vunpack.c.l.b16 %v1894
    %v2094 = vunpack.c.h.b16 %v1894
    %v2095 = vunpack.c.l.b16 %v1895
    %v2096 = vunpack.c.h.b16 %v1895
    %v2097 = vunpack.c.l.b16 %v1896
    %v2098 = vunpack.c.h.b16 %v1896
    %v2099 = vunpack.c.l.b16 %v1897
    %v2100 = vunpack.c.h.b16 %v1897
    %v2101 = vpack.c.b16 %v1975, %v1973
    %v2102 = vpack.c.b16 %v1976, %v1974
    %v2103 = vpack.c.b16 %v1979, %v1977
    %v2104 = vpack.c.b16 %v1980, %v1978
    %v2105 = vpack.c.b16 %v1983, %v1981
    %v2106 = vpack.c.b16 %v1984, %v1982
    %v2107 = vpack.c.b16 %v1987, %v1985
    %v2108 = vpack.c.b16 %v1988, %v1986
    %v2109 = vpack.c.b16 %v1991, %v1989
    %v2110 = vpack.c.b16 %v1992, %v1990
    %v2111 = vpack.c.b16 %v1995, %v1993
    %v2112 = vpack.c.b16 %v1996, %v1994
    %v2113 = vpack.c.b16 %v1999, %v1997
    %v2114 = vpack.c.b16 %v2000, %v1998
    %v2115 = vpack.c.b16 %v2003, %v2001
    %v2116 = vpack.c.b16 %v2004, %v2002
    %v2117 = vpack.c.b16 %v2007, %v2005
    %v2118 = vpack.c.b16 %v2008, %v2006
    %v2119 = vpack.c.b16 %v2011, %v2009
    %v2120 = vpack.c.b16 %v2012, %v2010
    %v2121 = vpack.c.b16 %v2015, %v2013
    %v2122 = vpack.c.b16 %v2016, %v2014
    %v2123 = vpack.c.b16 %v2019, %v2017
    %v2124 = vpack.c.b16 %v2020, %v2018
    %v2125 = vpack.c.b16 %v2023, %v2021
    %v2126 = vpack.c.b16 %v2024, %v2022
    %v2127 = vpack.c.b16 %v2027, %v2025
    %v2128 = vpack.c.b16 %v2028, %v2026
    %v2129 = vpack.c.b16 %v2031, %v2029
    %v2130 = vpack.c.b16 %v2032, %v2030
    %v2131 = vpack.c.b16 %v2035, %v2033
    %v2132 = vpack.c.b16 %v2036, %v2034
    %v2133 = vpack.c.b16 %v2039, %v2037
    %v2134 = vpack.c.b16 %v2040, %v2038
    %v2135 = vpack.c.b16 %v2043, %v2041
    %v2136 = vpack.c.b16 %v2044, %v2042
    %v2137 = vpack.c.b16 %v2047, %v2045
    %v2138 = vpack.c.b16 %v2048, %v2046
    %v2139 = vpack.c.b16 %v2051, %v2049
    %v2140 = vpack.c.b16 %v2052, %v2050
    %v2141 = vpack.c.b16 %v2055, %v2053
    %v2142 = vpack.c.b16 %v2056, %v2054
    %v2143 = vpack.c.b16 %v2059, %v2057
    %v2144 = vpack.c.b16 %v2060, %v2058
    %v2145 = vpack.c.b16 %v2063, %v2061
    %v2146 = vpack.c.b16 %v2064, %v2062
    %v2147 = vpack.c.b16 %v2067, %v2065
    %v2148 = vpack.c.b16 %v2068, %v2066
    %v2149 = vpack.c.b16 %v2071, %v2069
    %v2150 = vpack.c.b16 %v2072, %v2070
    %v2151 = vpack.c.b16 %v2075, %v2073
    %v2152 = vpack.c.b16 %v2076, %v2074
    %v2153 = vpack.c.b16 %v2079, %v2077
    %v2154 = vpack.c.b16 %v2080, %v2078
    %v2155 = vpack.c.b16 %v2083, %v2081
    %v2156 = vpack.c.b16 %v2084, %v2082
    %v2157 = vpack.c.b16 %v2087, %v2085
    %v2158 = vpack.c.b16 %v2088, %v2086
    %v2159 = vpack.c.b16 %v2091, %v2089
    %v2160 = vpack.c.b16 %v2092, %v2090
    %v2161 = vpack.c.b16 %v2095, %v2093
    %v2162 = vpack.c.b16 %v2096, %v2094
    %v2163 = vpack.c.b16 %v2099, %v2097
    %v2164 = vpack.c.b16 %v2100, %v2098
    %2229 = vmatprep.subr.bf16.mxu0 %v2102
    %2230 = vmatpush1.bf16.msra.mxu0 %v2101
    %2231 = vmatprep.subr.bf16.mxu0 %v2104
    %2232 = vmatpush1.bf16.msra.mxu0 %v2103
    %2233 = vmatprep.subr.bf16.mxu0 %v2106
    %2234 = vmatpush1.bf16.msra.mxu0 %v2105
    %2235 = vmatprep.subr.bf16.mxu0 %v2108
    %2236 = vmatpush1.bf16.msra.mxu0 %v2107
    %2237 = vmatprep.subr.bf16.mxu0 %v2110
    %2238 = vmatpush1.bf16.msra.mxu0 %v2109
    %2239 = vmatprep.subr.bf16.mxu0 %v2112
    %2240 = vmatpush1.bf16.msra.mxu0 %v2111
    %2241 = vmatprep.subr.bf16.mxu0 %v2114
    %2242 = vmatpush1.bf16.msra.mxu0 %v2113
    %2243 = vmatprep.subr.bf16.mxu0 %v2116
    %2244 = vmatpush1.bf16.msra.mxu0 %v2115
    %2245 = vmatprep.subr.bf16.mxu0 %v2118
    %2246 = vmatpush1.bf16.msra.mxu0 %v2117
    %2247 = vmatprep.subr.bf16.mxu0 %v2120
    %2248 = vmatpush1.bf16.msra.mxu0 %v2119
    %2249 = vmatprep.subr.bf16.mxu0 %v2122
    %2250 = vmatpush1.bf16.msra.mxu0 %v2121
    %2251 = vmatprep.subr.bf16.mxu0 %v2124
    %2252 = vmatpush1.bf16.msra.mxu0 %v2123
    %2253 = vmatprep.subr.bf16.mxu0 %v2126
    %2254 = vmatpush1.bf16.msra.mxu0 %v2125
    %2255 = vmatprep.subr.bf16.mxu0 %v2128
    %2256 = vmatpush1.bf16.msra.mxu0 %v2127
    %2257 = vmatprep.subr.bf16.mxu0 %v2130
    %2258 = vmatpush1.bf16.msra.mxu0 %v2129
    %2259 = vmatprep.subr.bf16.mxu0 %v2132
    %2260 = vmatpush1.bf16.msra.mxu0 %v2131
    %2261 = vmatprep.mubr.bf16.mxu0 %v1831
    %2262 = vmatmul.mubr.bf16.gmra.mrb[0].mxu0 %v1830
    %v2263 = vpop.f32.mrb[0].mxu0
    %v2264 = vadd.f32 %v1902, %v2263
    %v2265 = vpop.f32.mrb[0].mxu0
    %v2266 = vadd.f32 %v1906, %v2265
    %v2267 = vpop.f32.mrb[0].mxu0
    %v2268 = vpop.f32.mrb[0].mxu0
    %2269 = vdwg.mxu0
    %2270 = vmatprep.subr.bf16.mxu0 %v2134
    %2271 = vmatpush1.bf16.msra.mxu0 %v2133
    %2272 = vmatprep.subr.bf16.mxu0 %v2136
    %2273 = vmatpush1.bf16.msra.mxu0 %v2135
    %2274 = vmatprep.subr.bf16.mxu0 %v2138
    %2275 = vmatpush1.bf16.msra.mxu0 %v2137
    %2276 = vmatprep.subr.bf16.mxu0 %v2140
    %2277 = vmatpush1.bf16.msra.mxu0 %v2139
    %2278 = vmatprep.subr.bf16.mxu0 %v2142
    %2279 = vmatpush1.bf16.msra.mxu0 %v2141
    %2280 = vmatprep.subr.bf16.mxu0 %v2144
    %2281 = vmatpush1.bf16.msra.mxu0 %v2143
    %2282 = vmatprep.subr.bf16.mxu0 %v2146
    %2283 = vmatpush1.bf16.msra.mxu0 %v2145
    %2284 = vmatprep.subr.bf16.mxu0 %v2148
    %2285 = vmatpush1.bf16.msra.mxu0 %v2147
    %2286 = vmatprep.subr.bf16.mxu0 %v2150
    %2287 = vmatpush1.bf16.msra.mxu0 %v2149
    %2288 = vmatprep.subr.bf16.mxu0 %v2152
    %2289 = vmatpush1.bf16.msra.mxu0 %v2151
    %2290 = vmatprep.subr.bf16.mxu0 %v2154
    %2291 = vmatpush1.bf16.msra.mxu0 %v2153
    %2292 = vmatprep.subr.bf16.mxu0 %v2156
    %2293 = vmatpush1.bf16.msra.mxu0 %v2155
    %2294 = vmatprep.subr.bf16.mxu0 %v2158
    %2295 = vmatpush1.bf16.msra.mxu0 %v2157
    %2296 = vmatprep.subr.bf16.mxu0 %v2160
    %2297 = vmatpush1.bf16.msra.mxu0 %v2159
    %2298 = vmatprep.subr.bf16.mxu0 %v2162
    %2299 = vmatpush1.bf16.msra.mxu0 %v2161
    %2300 = vmatprep.subr.bf16.mxu0 %v2164
    %2301 = vmatpush1.bf16.msra.mxu0 %v2163
    %2302 = vmatprep.mubr.bf16.mxu0 %v1833
    %2303 = vmatmul.mubr.bf16.gmra.mrb[0].mxu0 %v1832
    %v2304 = vpop.f32.mrb[0].mxu0
    %v2305 = vadd.f32 %v2264, %v2304
    %v2306 = vpop.f32.mrb[0].mxu0
    %v2307 = vadd.f32 %v2266, %v2306
    %v2308 = vpop.f32.mrb[0].mxu0
    %v2309 = vpop.f32.mrb[0].mxu0
    %2310 = vdwg.mxu0
    %v2311 = vmax.f32 %v2305, 0.0
    %v2312 = vmax.f32 %v2307, 0.0
    %v2313 = vpack.c.bf16 %v2311, %v2311
    %v2314 = vpack.c.bf16 %v2312, %v2312
    %v2315 = vld [vmem:[#allocation8] sm:$0xf]
    %v2316 = vld [vmem:[#allocation8 + $0x4] sm:$0xf]
    %v2317 = vld [vmem:[#allocation8 + $0x8] sm:$0xf]
    %v2318 = vld [vmem:[#allocation8 + $0xc] sm:$0xf]
    %v2319 = vld [vmem:[#allocation8 + $0x10] sm:$0xf]
    %v2320 = vld [vmem:[#allocation8 + $0x14] sm:$0xf]
    %v2321 = vld [vmem:[#allocation8 + $0x18] sm:$0xf]
    %v2322 = vld [vmem:[#allocation8 + $0x1c] sm:$0xf]
    %v2323 = vld [vmem:[#allocation8 + $0x20] sm:$0xf]
    %v2324 = vld [vmem:[#allocation8 + $0x24] sm:$0xf]
    %v2325 = vld [vmem:[#allocation8 + $0x28] sm:$0xf]
    %v2326 = vld [vmem:[#allocation8 + $0x2c] sm:$0xf]
    %v2327 = vld [vmem:[#allocation8 + $0x30] sm:$0xf]
    %v2328 = vld [vmem:[#allocation8 + $0x34] sm:$0xf]
    %v2329 = vld [vmem:[#allocation8 + $0x38] sm:$0xf]
    %v2330 = vld [vmem:[#allocation8 + $0x3c] sm:$0xf]
    %v2331 = vld [vmem:[#allocation8 + $0x40] sm:$0xf]
    %v2332 = vld [vmem:[#allocation8 + $0x44] sm:$0xf]
    %v2333 = vld [vmem:[#allocation8 + $0x48] sm:$0xf]
    %v2334 = vld [vmem:[#allocation8 + $0x4c] sm:$0xf]
    %v2335 = vld [vmem:[#allocation8 + $0x50] sm:$0xf]
    %v2336 = vld [vmem:[#allocation8 + $0x54] sm:$0xf]
    %v2337 = vld [vmem:[#allocation8 + $0x58] sm:$0xf]
    %v2338 = vld [vmem:[#allocation8 + $0x5c] sm:$0xf]
    %v2339 = vld [vmem:[#allocation8 + $0x60] sm:$0xf]
    %v2340 = vld [vmem:[#allocation8 + $0x64] sm:$0xf]
    %v2341 = vld [vmem:[#allocation8 + $0x68] sm:$0xf]
    %v2342 = vld [vmem:[#allocation8 + $0x6c] sm:$0xf]
    %v2343 = vld [vmem:[#allocation8 + $0x70] sm:$0xf]
    %v2344 = vld [vmem:[#allocation8 + $0x74] sm:$0xf]
    %v2345 = vld [vmem:[#allocation8 + $0x78] sm:$0xf]
    %v2346 = vld [vmem:[#allocation8 + $0x7c] sm:$0xf]
    %v2348 = vlaneseq
    %v2349 = vshrl.u32 %v2348, 7
    %v2350 = vsub.s32 0, %v2349
    %v2351 = vrot.slane %v102, %v2350
    %v2385 = vunpack.c.l.b16 %v2315
    %v2386 = vunpack.c.l.b16 %v2316
    %v2387 = vunpack.c.l.b16 %v2317
    %v2388 = vunpack.c.l.b16 %v2318
    %v2389 = vunpack.c.l.b16 %v2319
    %v2390 = vunpack.c.l.b16 %v2320
    %v2391 = vunpack.c.l.b16 %v2321
    %v2392 = vunpack.c.l.b16 %v2322
    %v2393 = vunpack.c.l.b16 %v2323
    %v2394 = vunpack.c.l.b16 %v2324
    %v2395 = vunpack.c.l.b16 %v2325
    %v2396 = vunpack.c.l.b16 %v2326
    %v2397 = vunpack.c.l.b16 %v2327
    %v2398 = vunpack.c.l.b16 %v2328
    %v2399 = vunpack.c.l.b16 %v2329
    %v2400 = vunpack.c.l.b16 %v2330
    %v2401 = vunpack.c.l.b16 %v2331
    %v2402 = vunpack.c.l.b16 %v2332
    %v2403 = vunpack.c.l.b16 %v2333
    %v2404 = vunpack.c.l.b16 %v2334
    %v2405 = vunpack.c.l.b16 %v2335
    %v2406 = vunpack.c.l.b16 %v2336
    %v2407 = vunpack.c.l.b16 %v2337
    %v2408 = vunpack.c.l.b16 %v2338
    %v2409 = vunpack.c.l.b16 %v2339
    %v2410 = vunpack.c.l.b16 %v2340
    %v2411 = vunpack.c.l.b16 %v2341
    %v2412 = vunpack.c.l.b16 %v2342
    %v2413 = vunpack.c.l.b16 %v2343
    %v2414 = vunpack.c.l.b16 %v2344
    %v2415 = vunpack.c.l.b16 %v2345
    %v2416 = vunpack.c.l.b16 %v2346
    %v2417 = vpack.c.b16 %v2386, %v2385
    %v2418 = vpack.c.b16 %v2388, %v2387
    %v2419 = vpack.c.b16 %v2390, %v2389
    %v2420 = vpack.c.b16 %v2392, %v2391
    %v2421 = vpack.c.b16 %v2394, %v2393
    %v2422 = vpack.c.b16 %v2396, %v2395
    %v2423 = vpack.c.b16 %v2398, %v2397
    %v2424 = vpack.c.b16 %v2400, %v2399
    %v2425 = vpack.c.b16 %v2402, %v2401
    %v2426 = vpack.c.b16 %v2404, %v2403
    %v2427 = vpack.c.b16 %v2406, %v2405
    %v2428 = vpack.c.b16 %v2408, %v2407
    %v2429 = vpack.c.b16 %v2410, %v2409
    %v2430 = vpack.c.b16 %v2412, %v2411
    %v2431 = vpack.c.b16 %v2414, %v2413
    %v2432 = vpack.c.b16 %v2416, %v2415
    %2449 = vmatprep.subr.bf16.mxu0 0
    %2450 = vmatpush1.bf16.msra.mxu0 %v2417
    %2451 = vmatprep.subr.bf16.mxu0 0
    %2452 = vmatpush1.bf16.msra.mxu0 %v2418
    %2453 = vmatprep.subr.bf16.mxu0 0
    %2454 = vmatpush1.bf16.msra.mxu0 %v2419
    %2455 = vmatprep.subr.bf16.mxu0 0
    %2456 = vmatpush1.bf16.msra.mxu0 %v2420
    %2457 = vmatprep.subr.bf16.mxu0 0
    %2458 = vmatpush1.bf16.msra.mxu0 %v2421
    %2459 = vmatprep.subr.bf16.mxu0 0
    %2460 = vmatpush1.bf16.msra.mxu0 %v2422
    %2461 = vmatprep.subr.bf16.mxu0 0
    %2462 = vmatpush1.bf16.msra.mxu0 %v2423
    %2463 = vmatprep.subr.bf16.mxu0 0
    %2464 = vmatpush1.bf16.msra.mxu0 %v2424
    %2465 = vmatprep.subr.bf16.mxu0 0
    %2466 = vmatpush1.bf16.msra.mxu0 %v2425
    %2467 = vmatprep.subr.bf16.mxu0 0
    %2468 = vmatpush1.bf16.msra.mxu0 %v2426
    %2469 = vmatprep.subr.bf16.mxu0 0
    %2470 = vmatpush1.bf16.msra.mxu0 %v2427
    %2471 = vmatprep.subr.bf16.mxu0 0
    %2472 = vmatpush1.bf16.msra.mxu0 %v2428
    %2473 = vmatprep.subr.bf16.mxu0 0
    %2474 = vmatpush1.bf16.msra.mxu0 %v2429
    %2475 = vmatprep.subr.bf16.mxu0 0
    %2476 = vmatpush1.bf16.msra.mxu0 %v2430
    %2477 = vmatprep.subr.bf16.mxu0 0
    %2478 = vmatpush1.bf16.msra.mxu0 %v2431
    %2479 = vmatprep.subr.bf16.mxu0 0
    %2480 = vmatpush1.bf16.msra.mxu0 %v2432
    %2481 = vmatprep.mubr.bf16.mxu0 %v2314
    %2482 = vmatmul.mubr.bf16.gmra.mrb[0].mxu0 %v2313
    %v2483 = vpop.f32.mrb[0].mxu0
    %v2484 = vadd.f32 %v2351, %v2483
    %v2485 = vpop.f32.mrb[0].mxu0
    %v2486 = vpop.f32.mrb[0].mxu0
    %v2487 = vpop.f32.mrb[0].mxu0
    %2488 = vdwg.mxu0
    %v2489 = vmax.f32 %v2484, 0.0
    %v2490 = vpack.c.bf16 %v2489, %v2489
    %v2491 = vld [vmem:[#allocation10] sm:$0xf]
    %v2492 = vld [vmem:[#allocation10 + $0x4] sm:$0xf]
    %v2493 = vld [vmem:[#allocation10 + $0x8] sm:$0xf]
    %v2494 = vld [vmem:[#allocation10 + $0xc] sm:$0xf]
    %v2495 = vld [vmem:[#allocation10 + $0x10] sm:$0xf]
    %v2496 = vld [vmem:[#allocation10 + $0x14] sm:$0xf]
    %v2497 = vld [vmem:[#allocation10 + $0x18] sm:$0xf]
    %v2498 = vld [vmem:[#allocation10 + $0x1c] sm:$0xf]
    %v2499 = vld [vmem:[#allocation10 + $0x20] sm:$0xf]
    %v2500 = vld [vmem:[#allocation10 + $0x24] sm:$0xf]
    %v2501 = vld [vmem:[#allocation10 + $0x28] sm:$0xf]
    %v2502 = vld [vmem:[#allocation10 + $0x2c] sm:$0xf]
    %v2503 = vld [vmem:[#allocation10 + $0x30] sm:$0xf]
    %v2504 = vld [vmem:[#allocation10 + $0x34] sm:$0xf]
    %v2505 = vld [vmem:[#allocation10 + $0x38] sm:$0xf]
    %v2506 = vld [vmem:[#allocation10 + $0x3c] sm:$0xf]
    %v2508 = vlaneseq
    %v2509 = vshrl.u32 %v2508, 7
    %v2510 = vsub.s32 0, %v2509
    %v2511 = vrot.slane %v103, %v2510
    %v2529 = vunpack.c.l.b16 %v2491
    %v2530 = vunpack.c.l.b16 %v2492
    %v2531 = vunpack.c.l.b16 %v2493
    %v2532 = vunpack.c.l.b16 %v2494
    %v2533 = vunpack.c.l.b16 %v2495
    %v2534 = vunpack.c.l.b16 %v2496
    %v2535 = vunpack.c.l.b16 %v2497
    %v2536 = vunpack.c.l.b16 %v2498
    %v2537 = vunpack.c.l.b16 %v2499
    %v2538 = vunpack.c.l.b16 %v2500
    %v2539 = vunpack.c.l.b16 %v2501
    %v2540 = vunpack.c.l.b16 %v2502
    %v2541 = vunpack.c.l.b16 %v2503
    %v2542 = vunpack.c.l.b16 %v2504
    %v2543 = vunpack.c.l.b16 %v2505
    %v2544 = vunpack.c.l.b16 %v2506
    %v2545 = vpack.c.b16 %v2530, %v2529
    %v2546 = vpack.c.b16 %v2532, %v2531
    %v2547 = vpack.c.b16 %v2534, %v2533
    %v2548 = vpack.c.b16 %v2536, %v2535
    %v2549 = vpack.c.b16 %v2538, %v2537
    %v2550 = vpack.c.b16 %v2540, %v2539
    %v2551 = vpack.c.b16 %v2542, %v2541
    %v2552 = vpack.c.b16 %v2544, %v2543
    %2561 = vmatprep.subr.bf16.mxu0 0
    %2562 = vmatpush1.bf16.msra.mxu0 %v2545
    %2563 = vmatprep.subr.bf16.mxu0 0
    %2564 = vmatpush1.bf16.msra.mxu0 %v2546
    %2565 = vmatprep.subr.bf16.mxu0 0
    %2566 = vmatpush1.bf16.msra.mxu0 %v2547
    %2567 = vmatprep.subr.bf16.mxu0 0
    %2568 = vmatpush1.bf16.msra.mxu0 %v2548
    %2569 = vmatprep.subr.bf16.mxu0 0
    %2570 = vmatpush1.bf16.msra.mxu0 %v2549
    %2571 = vmatprep.subr.bf16.mxu0 0
    %2572 = vmatpush1.bf16.msra.mxu0 %v2550
    %2573 = vmatprep.subr.bf16.mxu0 0
    %2574 = vmatpush1.bf16.msra.mxu0 %v2551
    %2575 = vmatprep.subr.bf16.mxu0 0
    %2576 = vmatpush1.bf16.msra.mxu0 %v2552
    %2577 = vmatprep.subr.bf16.mxu0 0
    %2578 = vmatpush1.bf16.msra.mxu0 0
    %2579 = vmatprep.subr.bf16.mxu0 0
    %2580 = vmatpush1.bf16.msra.mxu0 0
    %2581 = vmatprep.subr.bf16.mxu0 0
    %2582 = vmatpush1.bf16.msra.mxu0 0
    %2583 = vmatprep.subr.bf16.mxu0 0
    %2584 = vmatpush1.bf16.msra.mxu0 0
    %2585 = vmatprep.subr.bf16.mxu0 0
    %2586 = vmatpush1.bf16.msra.mxu0 0
    %2587 = vmatprep.subr.bf16.mxu0 0
    %2588 = vmatpush1.bf16.msra.mxu0 0
    %2589 = vmatprep.subr.bf16.mxu0 0
    %2590 = vmatpush1.bf16.msra.mxu0 0
    %2591 = vmatprep.subr.bf16.mxu0 0
    %2592 = vmatpush1.bf16.msra.mxu0 0
    %2593 = vmatprep.mubr.bf16.mxu0 0
    %2594 = vmatmul.mubr.bf16.gmra.mrb[0].mxu0 %v2490
    %v2595 = vpop.f32.mrb[0].mxu0
    %v2596 = vadd.f32 %v2511, %v2595
    %v2597 = vpop.f32.mrb[0].mxu0
    %v2598 = vpop.f32.mrb[0].mxu0
    %v2599 = vpop.f32.mrb[0].mxu0
    %2600 = vdwg.mxu0
    %2601 = vst [vmem:[#allocation11] sm:$0xff] %v2596
    // Predicated region
    $region58: #{tpu_custom_call.1} parent=1 // pred_check
      _
    $region59: #{tpu_custom_call.1} parent=1 // pred_check_branch
      %2603 = sbr.rel (0) target = $region61
    $region60: #{tpu_custom_call.1} parent=1 // pred_region
      %s2605 = ssub.s32 128, 128
      %2606 = vsyncadd [#allocation4], %s2605
      %s2608 = sshll.u32 [#allocation11], 4
      %s2609 = int_to_ptr.vmem [resolvable:$true] %s2608
      %2611 = dma.vmem_to_hbm [thread:$0]  %s2609, 128, %s9, [#allocation4]
    $region61: #{tpu_custom_call.1} parent=1 // pred_fallthru
      _
    // Predicated region
    $region62: #{tpu_custom_call.1} parent=1 // pred_check
      _
    $region63: #{tpu_custom_call.1} parent=1 // pred_check_branch
      %2613 = sbr.rel (0) target = $region65
    $region64: #{tpu_custom_call.1} parent=1 // pred_region
      %2614 = dma.done [#allocation4], 128
    $region65: #{tpu_custom_call.1} parent=1 // pred_fallthru
      _
    %2615 = vsyncpa [#allocation3], 1
    %2616 = vsyncpa [#allocation6], 1
    %2617 = vsyncpa [#allocation9], 1
    %2618 = vsyncpa [#allocation4], 1

</llo_original>
